<compile_context>
chip_gen: v7x
topology: tpu7x:2x2x1
jax: 0.10.0
libtpu: 0.0.40
codegen_flags: <defaults>
</compile_context>

<pallas_src>
import jax
import jax.numpy as jnp
from jax import lax
from jax.experimental import pallas as pl
from jax.experimental.pallas import tpu as pltpu


IN_DIM = 20
OUT_DIM = 2

# Layer dims of the module: (in, out) per linear layer (PyTorch order).
LAYER_DIMS = {
    "fc1":   (20, 32),
    "fc2":   (32, 32),
    "fc3":   (32, 32),
    "fc4":   (32, 16),
    "fc5":   (16, 8),
    "fc6":   (8, 4),
    "fc7":   (4, 2),
    "skip1": (4, 2),
    "skip2": (32, 2),
    "skip3": (4, 2),
}
LAYER_ORDER = list(LAYER_DIMS.keys())

# Layers actually fed to the kernel after host-side folding:
#   fc23 = fc3 ∘ dropout1 ∘ fc2, fc56 = fc6 ∘ dropout2 ∘ fc5,
#   head = fc7 + skip1 + skip3 (same input, summed).
FUSED_ORDER = ["fc1", "fc23", "fc4", "fc56", "skip2", "head"]


def _round_up(n, m):
    return ((n + m - 1) // m) * m


def _pick_batch_tiling(B, tb_max):
    """Pick (tb, b_pad, n_steps): tb a multiple of 512, small padding waste,
    and >=2 grid steps once the batch is big enough (v7x megacore)."""
    n = pl.cdiv(max(B, 1), tb_max)
    if n == 1 and B > 1024:
        n = 2                                   # keep both v7x TCs busy
    tb = min(tb_max, _round_up(pl.cdiv(max(B, 1), n), 512))
    return tb, n * tb, n


def mlp_kernel(x_ref,
               w1, b1, w23, b23, w4, b4, w56, b56, ws2, bs2, wh, bh,
               out_ref):
    """x_ref: [tb, 20] row-major tile.  Weights are [out, in], biases [out, 1].
    All intermediate activations are batch-on-lanes ([feat, tb])."""

    def lin(w_ref, act, b_ref):
        return jnp.dot(w_ref[...], act,
                       preferred_element_type=jnp.float32) + b_ref[...]

    # fc1: contract the feature dim of the row-major x tile directly
    # (W1[32,20] · x[tb,20]^T -> [32, tb]).  This does the relayout to
    # batch-on-lanes in-kernel instead of via an XLA transpose + extra HBM
    # round trip of x.
    h = lax.dot_general(w1[...], x_ref[...],
                        dimension_numbers=(((1,), (1,)), ((), ())),
                        preferred_element_type=jnp.float32) + b1[...]
    h = jnp.maximum(h, 0.0)                     # relu1                 [32, tb]

    r1 = jnp.maximum(lin(w23, h, b23), 0.0)     # fc3∘fc2 + relu2       [32, tb]
    acc = lin(ws2, r1, bs2)                     # skip2 partial (early) [ 2, tb]
    r2 = jnp.maximum(lin(w4, r1, b4), 0.0)      # fc4 + relu3           [16, tb]
    h2 = jnp.maximum(lin(w56, r2, b56), 0.0)    # fc6∘fc5 + relu4       [ 4, tb]
    out = acc + lin(wh, h2, bh)                 # fc7 + skip1 + skip3   [ 2, tb]
    out_ref[...] = out.astype(out_ref.dtype)


def init_params(key):
    """Deterministic PyTorch-style init; weights stored (out, in), bias (out,)."""
    params = []
    for name in LAYER_ORDER:
        fan_in, fan_out = LAYER_DIMS[name]
        key, kw, kb = jax.random.split(key, 3)
        bound = 1.0 / jnp.sqrt(fan_in)
        w = jax.random.uniform(kw, (fan_out, fan_in), jnp.float32, -bound, bound)
        b = jax.random.uniform(kb, (fan_out,), jnp.float32, -bound, bound)
        params.append((w, b))
    return params


def fold_params(params):
    """Host-side algebraic folds (HIGHEST precision so the fold itself adds
    only ~f32-rounding error, well under the 1e-5 tolerance)."""
    hi = lax.Precision.HIGHEST
    p = dict(zip(LAYER_ORDER, params))
    w23 = jnp.matmul(p["fc3"][0], p["fc2"][0], precision=hi)
    b23 = jnp.matmul(p["fc3"][0], p["fc2"][1], precision=hi) + p["fc3"][1]
    w56 = jnp.matmul(p["fc6"][0], p["fc5"][0], precision=hi)
    b56 = jnp.matmul(p["fc6"][0], p["fc5"][1], precision=hi) + p["fc6"][1]
    wh = p["fc7"][0] + p["skip1"][0] + p["skip3"][0]
    bh = p["fc7"][1] + p["skip1"][1] + p["skip3"][1]
    fused = {
        "fc1": p["fc1"], "fc23": (w23, b23), "fc4": p["fc4"],
        "fc56": (w56, b56), "skip2": p["skip2"], "head": (wh, bh),
    }
    flat = []
    for name in FUSED_ORDER:
        w, b = fused[name]
        flat.append(jnp.asarray(w, jnp.float32))                 # [out, in]
        flat.append(jnp.asarray(b, jnp.float32).reshape(-1, 1))  # [out, 1]
    return flat


def more_complex_model(x, params, *, tb_max=8192):
    """x: [B, 20] (PyTorch row-major). Returns [B, 2]."""
    B = x.shape[0]
    flat_params = fold_params(params)
    tb, b_pad, n_steps = _pick_batch_tiling(B, tb_max)

    x = x.astype(jnp.float32)
    if b_pad != B:
        x = jnp.pad(x, ((0, b_pad - B), (0, 0)))   # zero rows, sliced off below

    in_specs = [pl.BlockSpec((tb, IN_DIM), lambda i: (i, 0))]
    for arr in flat_params:
        # Full-array block, same block index every step -> DMA'd once and
        # resident in VMEM across the whole grid.
        in_specs.append(pl.BlockSpec(arr.shape, lambda i: (0, 0)))

    outT = pl.pallas_call(
        mlp_kernel,
        out_shape=jax.ShapeDtypeStruct((OUT_DIM, b_pad), jnp.float32),
        grid=(n_steps,),
        in_specs=in_specs,
        out_specs=pl.BlockSpec((OUT_DIM, tb), lambda i: (0, i)),
        compiler_params=pltpu.CompilerParams(
            dimension_semantics=("parallel",),
            vmem_limit_bytes=32 * 1024 * 1024),
    )(x, *flat_params)

    # Output stays lane-dense [2, b_pad] in the kernel; tiny transpose here.
    return outT[:, :B].T


def reference(x, params):
    """Pure-JAX reference in the original [B, feat] layout (unfused)."""
    p = dict(zip(LAYER_ORDER, params))
    lin = lambda v, name: v @ p[name][0].T + p[name][1]
    out = jax.nn.relu(lin(x, "fc1"))
    residual1 = lin(out, "fc2")
    residual1 = jax.nn.relu(lin(residual1, "fc3"))
    residual2 = jax.nn.relu(lin(residual1, "fc4"))
    out = lin(residual2, "fc5")
    out = jax.nn.relu(lin(out, "fc6"))
    return (lin(out, "fc7") + lin(out, "skip1")
            + lin(residual1, "skip2") + lin(out, "skip3"))


if __name__ == "__main__":
    key = jax.random.PRNGKey(0)
    key_x, key_x2, key_p = jax.random.split(key, 3)
    params = init_params(key_p)

    # Small-shape check (single grid step).
    B = 8
    x = jax.random.normal(key_x, (B, IN_DIM), jnp.float32)
    out = jax.block_until_ready(more_complex_model(x, params))
    ref = reference(x, params)
    assert out.shape == (B, OUT_DIM), out.shape
    assert jnp.allclose(out, ref, atol=1e-5, rtol=1e-5), (out, ref)

    # Multi-tile check (exercises grid=2 + batch padding path).
    B2 = 1536
    x2 = jax.random.normal(key_x2, (B2, IN_DIM), jnp.float32)
    out2 = jax.block_until_ready(more_complex_model(x2, params))
    ref2 = reference(x2, params)
    assert out2.shape == (B2, OUT_DIM), out2.shape
    assert jnp.allclose(out2, ref2, atol=1e-5, rtol=1e-5)

    print("KERNEL_OK")
</pallas_src>

<mosaic_0001>
module attributes {stable_mosaic.version = 11 : i64} {
  func.func @mlp_kernel(%arg0: i32, %arg1: memref<512x20xf32, #tpu.memory_space<vmem>>, %arg2: memref<32x20xf32, #tpu.memory_space<vmem>>, %arg3: memref<32x1xf32, #tpu.memory_space<vmem>>, %arg4: memref<32x32xf32, #tpu.memory_space<vmem>>, %arg5: memref<32x1xf32, #tpu.memory_space<vmem>>, %arg6: memref<16x32xf32, #tpu.memory_space<vmem>>, %arg7: memref<16x1xf32, #tpu.memory_space<vmem>>, %arg8: memref<4x16xf32, #tpu.memory_space<vmem>>, %arg9: memref<4x1xf32, #tpu.memory_space<vmem>>, %arg10: memref<2x32xf32, #tpu.memory_space<vmem>>, %arg11: memref<2x1xf32, #tpu.memory_space<vmem>>, %arg12: memref<2x4xf32, #tpu.memory_space<vmem>>, %arg13: memref<2x1xf32, #tpu.memory_space<vmem>>, %arg14: memref<2x512xf32, #tpu.memory_space<vmem>>) attributes {dimension_semantics = [#tpu.dimension_semantics<parallel>], iteration_bounds = array<i64: 1>, scalar_prefetch = 0 : i64, scratch_operands = 0 : i64, tpu.core_type = #tpu.core_type<tc>, window_params = [{transform_indices = @transform_0, window_bounds = array<i64: 512, 20>}, {pipeline_mode = #tpu.pipeline_mode<synchronous>, transform_indices = @transform_1, window_bounds = array<i64: 32, 20>}, {pipeline_mode = #tpu.pipeline_mode<synchronous>, transform_indices = @transform_2, window_bounds = array<i64: 32, 1>}, {pipeline_mode = #tpu.pipeline_mode<synchronous>, transform_indices = @transform_3, window_bounds = array<i64: 32, 32>}, {pipeline_mode = #tpu.pipeline_mode<synchronous>, transform_indices = @transform_4, window_bounds = array<i64: 32, 1>}, {pipeline_mode = #tpu.pipeline_mode<synchronous>, transform_indices = @transform_5, window_bounds = array<i64: 16, 32>}, {pipeline_mode = #tpu.pipeline_mode<synchronous>, transform_indices = @transform_6, window_bounds = array<i64: 16, 1>}, {pipeline_mode = #tpu.pipeline_mode<synchronous>, transform_indices = @transform_7, window_bounds = array<i64: 4, 16>}, {pipeline_mode = #tpu.pipeline_mode<synchronous>, transform_indices = @transform_8, window_bounds = array<i64: 4, 1>}, {pipeline_mode = #tpu.pipeline_mode<synchronous>, transform_indices = @transform_9, window_bounds = array<i64: 2, 32>}, {pipeline_mode = #tpu.pipeline_mode<synchronous>, transform_indices = @transform_10, window_bounds = array<i64: 2, 1>}, {pipeline_mode = #tpu.pipeline_mode<synchronous>, transform_indices = @transform_11, window_bounds = array<i64: 2, 4>}, {pipeline_mode = #tpu.pipeline_mode<synchronous>, transform_indices = @transform_12, window_bounds = array<i64: 2, 1>}, {transform_indices = @transform_13, window_bounds = array<i64: 2, 512>}]} {
    %c0 = arith.constant 0 : index
    %c0_0 = arith.constant 0 : index
    %0 = vector.load %arg2[%c0, %c0_0] : memref<32x20xf32, #tpu.memory_space<vmem>>, vector<32x20xf32>
    %c0_1 = arith.constant 0 : index
    %c0_2 = arith.constant 0 : index
    %1 = vector.load %arg1[%c0_1, %c0_2] : memref<512x20xf32, #tpu.memory_space<vmem>>, vector<512x20xf32>
    %cst = arith.constant dense<0.000000e+00> : vector<32x512xf32>
    %2 = tpu.matmul %0, %1, %cst {dimension_numbers = #tpu.dot_dimension_numbers<[1], [1], [0], [0], [0, 0, 1, 0], [], []>} : vector<32x20xf32>, vector<512x20xf32>, vector<32x512xf32> -> vector<32x512xf32>
    %c0_3 = arith.constant 0 : index
    %c0_4 = arith.constant 0 : index
    %3 = vector.load %arg3[%c0_3, %c0_4] : memref<32x1xf32, #tpu.memory_space<vmem>>, vector<32x1xf32>
    %4 = vector.broadcast %3 : vector<32x1xf32> to vector<32x512xf32>
    %5 = arith.addf %2, %4 : vector<32x512xf32>
    %cst_5 = arith.constant 0.000000e+00 : f32
    %6 = vector.broadcast %cst_5 : f32 to vector<32x512xf32>
    %7 = arith.maximumf %5, %6 : vector<32x512xf32>
    %c0_6 = arith.constant 0 : index
    %c0_7 = arith.constant 0 : index
    %8 = vector.load %arg4[%c0_6, %c0_7] : memref<32x32xf32, #tpu.memory_space<vmem>>, vector<32x32xf32>
    %cst_8 = arith.constant dense<0.000000e+00> : vector<32x512xf32>
    %9 = tpu.matmul %8, %7, %cst_8 {dimension_numbers = #tpu.dot_dimension_numbers<[1], [0], [0], [1], [0, 0, 1, 1], [], []>} : vector<32x32xf32>, vector<32x512xf32>, vector<32x512xf32> -> vector<32x512xf32>
    %c0_9 = arith.constant 0 : index
    %c0_10 = arith.constant 0 : index
    %10 = vector.load %arg5[%c0_9, %c0_10] : memref<32x1xf32, #tpu.memory_space<vmem>>, vector<32x1xf32>
    %11 = vector.broadcast %10 : vector<32x1xf32> to vector<32x512xf32>
    %12 = arith.addf %9, %11 : vector<32x512xf32>
    %cst_11 = arith.constant 0.000000e+00 : f32
    %13 = vector.broadcast %cst_11 : f32 to vector<32x512xf32>
    %14 = arith.maximumf %12, %13 : vector<32x512xf32>
    %c0_12 = arith.constant 0 : index
    %c0_13 = arith.constant 0 : index
    %15 = vector.load %arg10[%c0_12, %c0_13] : memref<2x32xf32, #tpu.memory_space<vmem>>, vector<2x32xf32>
    %cst_14 = arith.constant dense<0.000000e+00> : vector<2x512xf32>
    %16 = tpu.matmul %15, %14, %cst_14 {dimension_numbers = #tpu.dot_dimension_numbers<[1], [0], [0], [1], [0, 0, 1, 1], [], []>} : vector<2x32xf32>, vector<32x512xf32>, vector<2x512xf32> -> vector<2x512xf32>
    %c0_15 = arith.constant 0 : index
    %c0_16 = arith.constant 0 : index
    %17 = vector.load %arg11[%c0_15, %c0_16] : memref<2x1xf32, #tpu.memory_space<vmem>>, vector<2x1xf32>
    %18 = vector.broadcast %17 : vector<2x1xf32> to vector<2x512xf32>
    %19 = arith.addf %16, %18 : vector<2x512xf32>
    %c0_17 = arith.constant 0 : index
    %c0_18 = arith.constant 0 : index
    %20 = vector.load %arg6[%c0_17, %c0_18] : memref<16x32xf32, #tpu.memory_space<vmem>>, vector<16x32xf32>
    %cst_19 = arith.constant dense<0.000000e+00> : vector<16x512xf32>
    %21 = tpu.matmul %20, %14, %cst_19 {dimension_numbers = #tpu.dot_dimension_numbers<[1], [0], [0], [1], [0, 0, 1, 1], [], []>} : vector<16x32xf32>, vector<32x512xf32>, vector<16x512xf32> -> vector<16x512xf32>
    %c0_20 = arith.constant 0 : index
    %c0_21 = arith.constant 0 : index
    %22 = vector.load %arg7[%c0_20, %c0_21] : memref<16x1xf32, #tpu.memory_space<vmem>>, vector<16x1xf32>
    %23 = vector.broadcast %22 : vector<16x1xf32> to vector<16x512xf32>
    %24 = arith.addf %21, %23 : vector<16x512xf32>
    %cst_22 = arith.constant 0.000000e+00 : f32
    %25 = vector.broadcast %cst_22 : f32 to vector<16x512xf32>
    %26 = arith.maximumf %24, %25 : vector<16x512xf32>
    %c0_23 = arith.constant 0 : index
    %c0_24 = arith.constant 0 : index
    %27 = vector.load %arg8[%c0_23, %c0_24] : memref<4x16xf32, #tpu.memory_space<vmem>>, vector<4x16xf32>
    %cst_25 = arith.constant dense<0.000000e+00> : vector<4x512xf32>
    %28 = tpu.matmul %27, %26, %cst_25 {dimension_numbers = #tpu.dot_dimension_numbers<[1], [0], [0], [1], [0, 0, 1, 1], [], []>} : vector<4x16xf32>, vector<16x512xf32>, vector<4x512xf32> -> vector<4x512xf32>
    %c0_26 = arith.constant 0 : index
    %c0_27 = arith.constant 0 : index
    %29 = vector.load %arg9[%c0_26, %c0_27] : memref<4x1xf32, #tpu.memory_space<vmem>>, vector<4x1xf32>
    %30 = vector.broadcast %29 : vector<4x1xf32> to vector<4x512xf32>
    %31 = arith.addf %28, %30 : vector<4x512xf32>
    %cst_28 = arith.constant 0.000000e+00 : f32
    %32 = vector.broadcast %cst_28 : f32 to vector<4x512xf32>
    %33 = arith.maximumf %31, %32 : vector<4x512xf32>
    %c0_29 = arith.constant 0 : index
    %c0_30 = arith.constant 0 : index
    %34 = vector.load %arg12[%c0_29, %c0_30] : memref<2x4xf32, #tpu.memory_space<vmem>>, vector<2x4xf32>
    %cst_31 = arith.constant dense<0.000000e+00> : vector<2x512xf32>
    %35 = tpu.matmul %34, %33, %cst_31 {dimension_numbers = #tpu.dot_dimension_numbers<[1], [0], [0], [1], [0, 0, 1, 1], [], []>} : vector<2x4xf32>, vector<4x512xf32>, vector<2x512xf32> -> vector<2x512xf32>
    %c0_32 = arith.constant 0 : index
    %c0_33 = arith.constant 0 : index
    %36 = vector.load %arg13[%c0_32, %c0_33] : memref<2x1xf32, #tpu.memory_space<vmem>>, vector<2x1xf32>
    %37 = vector.broadcast %36 : vector<2x1xf32> to vector<2x512xf32>
    %38 = arith.addf %35, %37 : vector<2x512xf32>
    %39 = arith.addf %19, %38 : vector<2x512xf32>
    %c0_34 = arith.constant 0 : index
    %c0_35 = arith.constant 0 : index
    %40 = vector.load %arg14[%c0_34, %c0_35] : memref<2x512xf32, #tpu.memory_space<vmem>>, vector<2x512xf32>
    tpu.vector_store %arg14[%c0_34, %c0_35], %39 {strides = array<i32>} : memref<2x512xf32, #tpu.memory_space<vmem>>, vector<2x512xf32>,
    return
  }
  func.func @transform_0(%arg0: i32) -> (i32, i32) {
    %c0_i32 = arith.constant 0 : i32
    %c0_i32_0 = arith.constant 0 : i32
    return %arg0, %c0_i32 : i32, i32
  }
  func.func @transform_1(%arg0: i32) -> (i32, i32) {
    %c0_i32 = arith.constant 0 : i32
    %c0_i32_0 = arith.constant 0 : i32
    %c0_i32_1 = arith.constant 0 : i32
    return %c0_i32, %c0_i32_0 : i32, i32
  }
  func.func @transform_2(%arg0: i32) -> (i32, i32) {
    %c0_i32 = arith.constant 0 : i32
    %c0_i32_0 = arith.constant 0 : i32
    %c0_i32_1 = arith.constant 0 : i32
    return %c0_i32, %c0_i32_0 : i32, i32
  }
  func.func @transform_3(%arg0: i32) -> (i32, i32) {
    %c0_i32 = arith.constant 0 : i32
    %c0_i32_0 = arith.constant 0 : i32
    %c0_i32_1 = arith.constant 0 : i32
    return %c0_i32, %c0_i32_0 : i32, i32
  }
  func.func @transform_4(%arg0: i32) -> (i32, i32) {
    %c0_i32 = arith.constant 0 : i32
    %c0_i32_0 = arith.constant 0 : i32
    %c0_i32_1 = arith.constant 0 : i32
    return %c0_i32, %c0_i32_0 : i32, i32
  }
  func.func @transform_5(%arg0: i32) -> (i32, i32) {
    %c0_i32 = arith.constant 0 : i32
    %c0_i32_0 = arith.constant 0 : i32
    %c0_i32_1 = arith.constant 0 : i32
    return %c0_i32, %c0_i32_0 : i32, i32
  }
  func.func @transform_6(%arg0: i32) -> (i32, i32) {
    %c0_i32 = arith.constant 0 : i32
    %c0_i32_0 = arith.constant 0 : i32
    %c0_i32_1 = arith.constant 0 : i32
    return %c0_i32, %c0_i32_0 : i32, i32
  }
  func.func @transform_7(%arg0: i32) -> (i32, i32) {
    %c0_i32 = arith.constant 0 : i32
    %c0_i32_0 = arith.constant 0 : i32
    %c0_i32_1 = arith.constant 0 : i32
    return %c0_i32, %c0_i32_0 : i32, i32
  }
  func.func @transform_8(%arg0: i32) -> (i32, i32) {
    %c0_i32 = arith.constant 0 : i32
    %c0_i32_0 = arith.constant 0 : i32
    %c0_i32_1 = arith.constant 0 : i32
    return %c0_i32, %c0_i32_0 : i32, i32
  }
  func.func @transform_9(%arg0: i32) -> (i32, i32) {
    %c0_i32 = arith.constant 0 : i32
    %c0_i32_0 = arith.constant 0 : i32
    %c0_i32_1 = arith.constant 0 : i32
    return %c0_i32, %c0_i32_0 : i32, i32
  }
  func.func @transform_10(%arg0: i32) -> (i32, i32) {
    %c0_i32 = arith.constant 0 : i32
    %c0_i32_0 = arith.constant 0 : i32
    %c0_i32_1 = arith.constant 0 : i32
    return %c0_i32, %c0_i32_0 : i32, i32
  }
  func.func @transform_11(%arg0: i32) -> (i32, i32) {
    %c0_i32 = arith.constant 0 : i32
    %c0_i32_0 = arith.constant 0 : i32
    %c0_i32_1 = arith.constant 0 : i32
    return %c0_i32, %c0_i32_0 : i32, i32
  }
  func.func @transform_12(%arg0: i32) -> (i32, i32) {
    %c0_i32 = arith.constant 0 : i32
    %c0_i32_0 = arith.constant 0 : i32
    %c0_i32_1 = arith.constant 0 : i32
    return %c0_i32, %c0_i32_0 : i32, i32
  }
  func.func @transform_13(%arg0: i32) -> (i32, i32) {
    %c0_i32 = arith.constant 0 : i32
    %c0_i32_0 = arith.constant 0 : i32
    return %c0_i32, %arg0 : i32, i32
  }
}

</mosaic_0001>

<llo_original>
// kernel: tpu_custom_call.1
$region0: #{tpu_custom_call.1}
  #allocation0 [shape = 'u32[]', space=smem, size = 0x4, offset = 0x4, fixed_abs, tag = 'smem constant byte address 0x4 - core index']
  #allocation1 [shape = 'u32[144,128]{1,0:T(1,128)}', space=vmem, size = 0x12000, scoped, tag = 'internal scratch']
  %s0 = inlined_call_operand.vmem [shape: f32[512,20], index: 0, kind: input, shape index: {}]
  %s1 = inlined_call_operand.vmem [shape: f32[32,20], index: 1, kind: input, shape index: {}]
  %s2 = inlined_call_operand.vmem [shape: f32[32,1], index: 2, kind: input, shape index: {}]
  %s3 = inlined_call_operand.vmem [shape: f32[32,32], index: 3, kind: input, shape index: {}]
  %s4 = inlined_call_operand.vmem [shape: f32[32,1], index: 4, kind: input, shape index: {}]
  %s5 = inlined_call_operand.vmem [shape: f32[16,32], index: 5, kind: input, shape index: {}]
  %s6 = inlined_call_operand.vmem [shape: f32[16,1], index: 6, kind: input, shape index: {}]
  %s7 = inlined_call_operand.vmem [shape: f32[4,16], index: 7, kind: input, shape index: {}]
  %s8 = inlined_call_operand.vmem [shape: f32[4,1], index: 8, kind: input, shape index: {}]
  %s9 = inlined_call_operand.vmem [shape: f32[2,32], index: 9, kind: input, shape index: {}]
  %s10 = inlined_call_operand.vmem [shape: f32[2,1], index: 10, kind: input, shape index: {}]
  %s11 = inlined_call_operand.vmem [shape: f32[2,4], index: 11, kind: input, shape index: {}]
  %s12 = inlined_call_operand.vmem [shape: f32[2,1], index: 12, kind: input, shape index: {}]
  %s13 = inlined_call_operand.hbm [shape: f32[2,512], index: 13, kind: output, shape index: {}]
  %s14 = sld [smem:[#allocation0]]
  $region62: #{tpu_custom_call.1} parent=0
    _
  %s16 = ssub.s32 1, %s14
  %s17 = scalar_select 0, %s16, %s14
  $region1: #{tpu_custom_call.1} parent=0
    #allocation2 [shape = 'u8[4096]{0}', space=vmem, size = 0x1000, scoped, tag = 'output window, operand 0, single buffered']
    #allocation3 [shape = 's32[1]{0}', space=sflag, size = 0x4, scoped, tag = 'scoped memory for tpu_custom_call.1']
    %18 = vsyncpa [#allocation3], 0
    // Predicated region
    $region2: #{tpu_custom_call.1} parent=1 // pred_check
      _
    $region3: #{tpu_custom_call.1} parent=1 // pred_check_branch
      %20 = sbr.rel (0) target = $region5
    $region4: #{tpu_custom_call.1} parent=1 // pred_region
      _
    $region5: #{tpu_custom_call.1} parent=1 // pred_fallthru
      _
    // Predicated region
    $region6: #{tpu_custom_call.1} parent=1 // pred_check
      _
    $region7: #{tpu_custom_call.1} parent=1 // pred_check_branch
      %22 = sbr.rel (0) target = $region9
    $region8: #{tpu_custom_call.1} parent=1 // pred_region
      _
    $region9: #{tpu_custom_call.1} parent=1 // pred_fallthru
      _
    // Predicated region
    $region10: #{tpu_custom_call.1} parent=1 // pred_check
      _
    $region11: #{tpu_custom_call.1} parent=1 // pred_check_branch
      %24 = sbr.rel (0) target = $region13
    $region12: #{tpu_custom_call.1} parent=1 // pred_region
      _
    $region13: #{tpu_custom_call.1} parent=1 // pred_fallthru
      _
    // Predicated region
    $region14: #{tpu_custom_call.1} parent=1 // pred_check
      _
    $region15: #{tpu_custom_call.1} parent=1 // pred_check_branch
      %26 = sbr.rel (0) target = $region17
    $region16: #{tpu_custom_call.1} parent=1 // pred_region
      _
    $region17: #{tpu_custom_call.1} parent=1 // pred_fallthru
      _
    // Predicated region
    $region18: #{tpu_custom_call.1} parent=1 // pred_check
      _
    $region19: #{tpu_custom_call.1} parent=1 // pred_check_branch
      %28 = sbr.rel (0) target = $region21
    $region20: #{tpu_custom_call.1} parent=1 // pred_region
      _
    $region21: #{tpu_custom_call.1} parent=1 // pred_fallthru
      _
    // Predicated region
    $region22: #{tpu_custom_call.1} parent=1 // pred_check
      _
    $region23: #{tpu_custom_call.1} parent=1 // pred_check_branch
      %30 = sbr.rel (0) target = $region25
    $region24: #{tpu_custom_call.1} parent=1 // pred_region
      _
    $region25: #{tpu_custom_call.1} parent=1 // pred_fallthru
      _
    // Predicated region
    $region26: #{tpu_custom_call.1} parent=1 // pred_check
      _
    $region27: #{tpu_custom_call.1} parent=1 // pred_check_branch
      %32 = sbr.rel (0) target = $region29
    $region28: #{tpu_custom_call.1} parent=1 // pred_region
      _
    $region29: #{tpu_custom_call.1} parent=1 // pred_fallthru
      _
    // Predicated region
    $region30: #{tpu_custom_call.1} parent=1 // pred_check
      _
    $region31: #{tpu_custom_call.1} parent=1 // pred_check_branch
      %34 = sbr.rel (0) target = $region33
    $region32: #{tpu_custom_call.1} parent=1 // pred_region
      _
    $region33: #{tpu_custom_call.1} parent=1 // pred_fallthru
      _
    // Predicated region
    $region34: #{tpu_custom_call.1} parent=1 // pred_check
      _
    $region35: #{tpu_custom_call.1} parent=1 // pred_check_branch
      %36 = sbr.rel (0) target = $region37
    $region36: #{tpu_custom_call.1} parent=1 // pred_region
      _
    $region37: #{tpu_custom_call.1} parent=1 // pred_fallthru
      _
    // Predicated region
    $region38: #{tpu_custom_call.1} parent=1 // pred_check
      _
    $region39: #{tpu_custom_call.1} parent=1 // pred_check_branch
      %38 = sbr.rel (0) target = $region41
    $region40: #{tpu_custom_call.1} parent=1 // pred_region
      _
    $region41: #{tpu_custom_call.1} parent=1 // pred_fallthru
      _
    // Predicated region
    $region42: #{tpu_custom_call.1} parent=1 // pred_check
      _
    $region43: #{tpu_custom_call.1} parent=1 // pred_check_branch
      %40 = sbr.rel (0) target = $region45
    $region44: #{tpu_custom_call.1} parent=1 // pred_region
      _
    $region45: #{tpu_custom_call.1} parent=1 // pred_fallthru
      _
    // Predicated region
    $region46: #{tpu_custom_call.1} parent=1 // pred_check
      _
    $region47: #{tpu_custom_call.1} parent=1 // pred_check_branch
      %42 = sbr.rel (0) target = $region49
    $region48: #{tpu_custom_call.1} parent=1 // pred_region
      _
    $region49: #{tpu_custom_call.1} parent=1 // pred_fallthru
      _
    // Predicated region
    $region50: #{tpu_custom_call.1} parent=1 // pred_check
      _
    $region51: #{tpu_custom_call.1} parent=1 // pred_check_branch
      %44 = sbr.rel (0) target = $region53
    $region52: #{tpu_custom_call.1} parent=1 // pred_region
      _
    $region53: #{tpu_custom_call.1} parent=1 // pred_fallthru
      _
    %v45 = vld [vmem:[%s1] sm:$0xff]
    %v46 = vld [vmem:[%s1 + $0x8] sm:$0xff]
    %v47 = vld [vmem:[%s1 + $0x10] sm:$0xff]
    %v48 = vld [vmem:[%s1 + $0x18] sm:$0xff]
    %v49 = vld [vmem:[%s0] sm:$0xff]
    %v50 = vld [vmem:[%s0 + $0x8] sm:$0xff]
    %v51 = vld [vmem:[%s0 + $0x10] sm:$0xff]
    %v52 = vld [vmem:[%s0 + $0x18] sm:$0xff]
    %v53 = vld [vmem:[%s0 + $0x20] sm:$0xff]
    %v54 = vld [vmem:[%s0 + $0x28] sm:$0xff]
    %v55 = vld [vmem:[%s0 + $0x30] sm:$0xff]
    %v56 = vld [vmem:[%s0 + $0x38] sm:$0xff]
    %v57 = vld [vmem:[%s0 + $0x40] sm:$0xff]
    %v58 = vld [vmem:[%s0 + $0x48] sm:$0xff]
    %v59 = vld [vmem:[%s0 + $0x50] sm:$0xff]
    %v60 = vld [vmem:[%s0 + $0x58] sm:$0xff]
    %v61 = vld [vmem:[%s0 + $0x60] sm:$0xff]
    %v62 = vld [vmem:[%s0 + $0x68] sm:$0xff]
    %v63 = vld [vmem:[%s0 + $0x70] sm:$0xff]
    %v64 = vld [vmem:[%s0 + $0x78] sm:$0xff]
    %v65 = vld [vmem:[%s0 + $0x80] sm:$0xff]
    %v66 = vld [vmem:[%s0 + $0x88] sm:$0xff]
    %v67 = vld [vmem:[%s0 + $0x90] sm:$0xff]
    %v68 = vld [vmem:[%s0 + $0x98] sm:$0xff]
    %v69 = vld [vmem:[%s0 + $0xa0] sm:$0xff]
    %v70 = vld [vmem:[%s0 + $0xa8] sm:$0xff]
    %v71 = vld [vmem:[%s0 + $0xb0] sm:$0xff]
    %v72 = vld [vmem:[%s0 + $0xb8] sm:$0xff]
    %v73 = vld [vmem:[%s0 + $0xc0] sm:$0xff]
    %v74 = vld [vmem:[%s0 + $0xc8] sm:$0xff]
    %v75 = vld [vmem:[%s0 + $0xd0] sm:$0xff]
    %v76 = vld [vmem:[%s0 + $0xd8] sm:$0xff]
    %v77 = vld [vmem:[%s0 + $0xe0] sm:$0xff]
    %v78 = vld [vmem:[%s0 + $0xe8] sm:$0xff]
    %v79 = vld [vmem:[%s0 + $0xf0] sm:$0xff]
    %v80 = vld [vmem:[%s0 + $0xf8] sm:$0xff]
    %v81 = vld [vmem:[%s0 + $0x100] sm:$0xff]
    %v82 = vld [vmem:[%s0 + $0x108] sm:$0xff]
    %v83 = vld [vmem:[%s0 + $0x110] sm:$0xff]
    %v84 = vld [vmem:[%s0 + $0x118] sm:$0xff]
    %v85 = vld [vmem:[%s0 + $0x120] sm:$0xff]
    %v86 = vld [vmem:[%s0 + $0x128] sm:$0xff]
    %v87 = vld [vmem:[%s0 + $0x130] sm:$0xff]
    %v88 = vld [vmem:[%s0 + $0x138] sm:$0xff]
    %v89 = vld [vmem:[%s0 + $0x140] sm:$0xff]
    %v90 = vld [vmem:[%s0 + $0x148] sm:$0xff]
    %v91 = vld [vmem:[%s0 + $0x150] sm:$0xff]
    %v92 = vld [vmem:[%s0 + $0x158] sm:$0xff]
    %v93 = vld [vmem:[%s0 + $0x160] sm:$0xff]
    %v94 = vld [vmem:[%s0 + $0x168] sm:$0xff]
    %v95 = vld [vmem:[%s0 + $0x170] sm:$0xff]
    %v96 = vld [vmem:[%s0 + $0x178] sm:$0xff]
    %v97 = vld [vmem:[%s0 + $0x180] sm:$0xff]
    %v98 = vld [vmem:[%s0 + $0x188] sm:$0xff]
    %v99 = vld [vmem:[%s0 + $0x190] sm:$0xff]
    %v100 = vld [vmem:[%s0 + $0x198] sm:$0xff]
    %v101 = vld [vmem:[%s0 + $0x1a0] sm:$0xff]
    %v102 = vld [vmem:[%s0 + $0x1a8] sm:$0xff]
    %v103 = vld [vmem:[%s0 + $0x1b0] sm:$0xff]
    %v104 = vld [vmem:[%s0 + $0x1b8] sm:$0xff]
    %v105 = vld [vmem:[%s0 + $0x1c0] sm:$0xff]
    %v106 = vld [vmem:[%s0 + $0x1c8] sm:$0xff]
    %v107 = vld [vmem:[%s0 + $0x1d0] sm:$0xff]
    %v108 = vld [vmem:[%s0 + $0x1d8] sm:$0xff]
    %v109 = vld [vmem:[%s0 + $0x1e0] sm:$0xff]
    %v110 = vld [vmem:[%s0 + $0x1e8] sm:$0xff]
    %v111 = vld [vmem:[%s0 + $0x1f0] sm:$0xff]
    %v112 = vld [vmem:[%s0 + $0x1f8] sm:$0xff]
    %v113 = vld [vmem:[%s2] sm:$0xff]
    %v114 = vld [vmem:[%s2 + $0x8] sm:$0xff]
    %v115 = vld [vmem:[%s2 + $0x10] sm:$0xff]
    %v116 = vld [vmem:[%s2 + $0x18] sm:$0xff]
    %118 = vset.pattern.permute.xlu0 0
    %119 = vperm.xlu0 %118, %v113
    %v120 = vpop.permute.xlu0 %119
    %123 = vset.pattern.permute.xlu0 0
    %124 = vperm.xlu0 %123, %v114
    %v125 = vpop.permute.xlu0 %124
    %128 = vset.pattern.permute.xlu0 0
    %129 = vperm.xlu0 %128, %v115
    %v130 = vpop.permute.xlu0 %129
    %133 = vset.pattern.permute.xlu0 0
    %134 = vperm.xlu0 %133, %v116
    %v135 = vpop.permute.xlu0 %134
    %vm137 = vcmask 162816
    %v139 = vsel %vm137, %v45, 0
    %v142 = vsel %vm137, %v46, 0
    %v145 = vsel %vm137, %v47, 0
    %v148 = vsel %vm137, %v48, 0
    %v151 = vsel %vm137, %v49, 0
    %v154 = vsel %vm137, %v50, 0
    %v157 = vsel %vm137, %v51, 0
    %v160 = vsel %vm137, %v52, 0
    %v163 = vsel %vm137, %v53, 0
    %v166 = vsel %vm137, %v54, 0
    %v169 = vsel %vm137, %v55, 0
    %v172 = vsel %vm137, %v56, 0
    %v175 = vsel %vm137, %v57, 0
    %v178 = vsel %vm137, %v58, 0
    %v181 = vsel %vm137, %v59, 0
    %v184 = vsel %vm137, %v60, 0
    %v187 = vsel %vm137, %v61, 0
    %v190 = vsel %vm137, %v62, 0
    %v193 = vsel %vm137, %v63, 0
    %v196 = vsel %vm137, %v64, 0
    %v199 = vsel %vm137, %v65, 0
    %v202 = vsel %vm137, %v66, 0
    %v205 = vsel %vm137, %v67, 0
    %v208 = vsel %vm137, %v68, 0
    %v211 = vsel %vm137, %v69, 0
    %v214 = vsel %vm137, %v70, 0
    %v217 = vsel %vm137, %v71, 0
    %v220 = vsel %vm137, %v72, 0
    %v223 = vsel %vm137, %v73, 0
    %v226 = vsel %vm137, %v74, 0
    %v229 = vsel %vm137, %v75, 0
    %v232 = vsel %vm137, %v76, 0
    %v235 = vsel %vm137, %v77, 0
    %v238 = vsel %vm137, %v78, 0
    %v241 = vsel %vm137, %v79, 0
    %v244 = vsel %vm137, %v80, 0
    %v247 = vsel %vm137, %v81, 0
    %v250 = vsel %vm137, %v82, 0
    %v253 = vsel %vm137, %v83, 0
    %v256 = vsel %vm137, %v84, 0
    %v259 = vsel %vm137, %v85, 0
    %v262 = vsel %vm137, %v86, 0
    %v265 = vsel %vm137, %v87, 0
    %v268 = vsel %vm137, %v88, 0
    %v271 = vsel %vm137, %v89, 0
    %v274 = vsel %vm137, %v90, 0
    %v277 = vsel %vm137, %v91, 0
    %v280 = vsel %vm137, %v92, 0
    %v283 = vsel %vm137, %v93, 0
    %v286 = vsel %vm137, %v94, 0
    %v289 = vsel %vm137, %v95, 0
    %v292 = vsel %vm137, %v96, 0
    %v295 = vsel %vm137, %v97, 0
    %v298 = vsel %vm137, %v98, 0
    %v301 = vsel %vm137, %v99, 0
    %v304 = vsel %vm137, %v100, 0
    %v307 = vsel %vm137, %v101, 0
    %v310 = vsel %vm137, %v102, 0
    %v313 = vsel %vm137, %v103, 0
    %v316 = vsel %vm137, %v104, 0
    %v319 = vsel %vm137, %v105, 0
    %v322 = vsel %vm137, %v106, 0
    %v325 = vsel %vm137, %v107, 0
    %v328 = vsel %vm137, %v108, 0
    %v331 = vsel %vm137, %v109, 0
    %v334 = vsel %vm137, %v110, 0
    %v337 = vsel %vm137, %v111, 0
    %v340 = vsel %vm137, %v112, 0
    %342 = vmatprep.subr.mxu0 0.0
    %343 = vmatpush1.xpose.msra.mxu0 %v151
    %344 = vmatprep.subr.mxu0 0.0
    %345 = vmatpush1.xpose.msra.mxu0 %v154
    %346 = vmatprep.subr.mxu0 0.0
    %347 = vmatpush1.xpose.msra.mxu0 %v157
    %348 = vmatprep.subr.mxu0 0.0
    %349 = vmatpush1.xpose.msra.mxu0 %v160
    %350 = vmatprep.subr.mxu0 0.0
    %351 = vmatpush1.xpose.msra.mxu0 %v163
    %352 = vmatprep.subr.mxu0 0.0
    %353 = vmatpush1.xpose.msra.mxu0 %v166
    %354 = vmatprep.subr.mxu0 0.0
    %355 = vmatpush1.xpose.msra.mxu0 %v169
    %356 = vmatprep.subr.mxu0 0.0
    %357 = vmatpush1.xpose.msra.mxu0 %v172
    %358 = vmatprep.subr.mxu0 0.0
    %359 = vmatpush1.xpose.msra.mxu0 %v175
    %360 = vmatprep.subr.mxu0 0.0
    %361 = vmatpush1.xpose.msra.mxu0 %v178
    %362 = vmatprep.subr.mxu0 0.0
    %363 = vmatpush1.xpose.msra.mxu0 %v181
    %364 = vmatprep.subr.mxu0 0.0
    %365 = vmatpush1.xpose.msra.mxu0 %v184
    %366 = vmatprep.subr.mxu0 0.0
    %367 = vmatpush1.xpose.msra.mxu0 %v187
    %368 = vmatprep.subr.mxu0 0.0
    %369 = vmatpush1.xpose.msra.mxu0 %v190
    %370 = vmatprep.subr.mxu0 0.0
    %371 = vmatpush1.xpose.msra.mxu0 %v193
    %372 = vmatprep.subr.mxu0 0.0
    %373 = vmatpush1.xpose.msra.mxu0 %v196
    %374 = vmatprep.subr.mxu0 0.0
    %375 = vmatpush1.xpose.msra.mxu0 %v199
    %376 = vmatprep.subr.mxu0 0.0
    %377 = vmatpush1.xpose.msra.mxu0 %v202
    %378 = vmatprep.subr.mxu0 0.0
    %379 = vmatpush1.xpose.msra.mxu0 %v205
    %380 = vmatprep.subr.mxu0 0.0
    %381 = vmatpush1.xpose.msra.mxu0 %v208
    %382 = vmatprep.subr.mxu0 0.0
    %383 = vmatpush1.xpose.msra.mxu0 %v211
    %384 = vmatprep.subr.mxu0 0.0
    %385 = vmatpush1.xpose.msra.mxu0 %v214
    %386 = vmatprep.subr.mxu0 0.0
    %387 = vmatpush1.xpose.msra.mxu0 %v217
    %388 = vmatprep.subr.mxu0 0.0
    %389 = vmatpush1.xpose.msra.mxu0 %v220
    %390 = vmatprep.subr.mxu0 0.0
    %391 = vmatpush1.xpose.msra.mxu0 %v223
    %392 = vmatprep.subr.mxu0 0.0
    %393 = vmatpush1.xpose.msra.mxu0 %v226
    %394 = vmatprep.subr.mxu0 0.0
    %395 = vmatpush1.xpose.msra.mxu0 %v229
    %396 = vmatprep.subr.mxu0 0.0
    %397 = vmatpush1.xpose.msra.mxu0 %v232
    %398 = vmatprep.subr.mxu0 0.0
    %399 = vmatpush1.xpose.msra.mxu0 %v235
    %400 = vmatprep.subr.mxu0 0.0
    %401 = vmatpush1.xpose.msra.mxu0 %v238
    %402 = vmatprep.subr.mxu0 0.0
    %403 = vmatpush1.xpose.msra.mxu0 %v241
    %404 = vmatprep.subr.mxu0 0.0
    %405 = vmatpush1.xpose.msra.mxu0 %v244
    %406 = vmatprep.mubr.f32.mxu0 0.0
    %407 = vmatmul.mubr.f32.gmra.mrb[0].mxu0 %v139
    %v408 = vpop.f32.mrb[0].mxu0
    %v409 = vadd.f32 %v120, %v408
    %v410 = vpop.f32.mrb[0].mxu0
    %v411 = vadd.f32 %v120, %v410
    %412 = vmatprep.mubr.f32.mxu0 0.0
    %413 = vmatmul.mubr.f32.gmra.mrb[0].mxu0 %v142
    %v414 = vpop.f32.mrb[0].mxu0
    %v415 = vadd.f32 %v125, %v414
    %v416 = vpop.f32.mrb[0].mxu0
    %v417 = vadd.f32 %v125, %v416
    %418 = vmatprep.mubr.f32.mxu0 0.0
    %419 = vmatmul.mubr.f32.gmra.mrb[0].mxu0 %v145
    %v420 = vpop.f32.mrb[0].mxu0
    %v421 = vadd.f32 %v130, %v420
    %v422 = vpop.f32.mrb[0].mxu0
    %v423 = vadd.f32 %v130, %v422
    %424 = vmatprep.mubr.f32.mxu0 0.0
    %425 = vmatmul.mubr.f32.gmra.mrb[0].mxu0 %v148
    %v426 = vpop.f32.mrb[0].mxu0
    %v427 = vadd.f32 %v135, %v426
    %v428 = vpop.f32.mrb[0].mxu0
    %v429 = vadd.f32 %v135, %v428
    %430 = vdwg.mxu0
    %431 = vmatprep.subr.mxu0 0.0
    %432 = vmatpush1.xpose.msra.mxu0 %v247
    %433 = vmatprep.subr.mxu0 0.0
    %434 = vmatpush1.xpose.msra.mxu0 %v250
    %435 = vmatprep.subr.mxu0 0.0
    %436 = vmatpush1.xpose.msra.mxu0 %v253
    %437 = vmatprep.subr.mxu0 0.0
    %438 = vmatpush1.xpose.msra.mxu0 %v256
    %439 = vmatprep.subr.mxu0 0.0
    %440 = vmatpush1.xpose.msra.mxu0 %v259
    %441 = vmatprep.subr.mxu0 0.0
    %442 = vmatpush1.xpose.msra.mxu0 %v262
    %443 = vmatprep.subr.mxu0 0.0
    %444 = vmatpush1.xpose.msra.mxu0 %v265
    %445 = vmatprep.subr.mxu0 0.0
    %446 = vmatpush1.xpose.msra.mxu0 %v268
    %447 = vmatprep.subr.mxu0 0.0
    %448 = vmatpush1.xpose.msra.mxu0 %v271
    %449 = vmatprep.subr.mxu0 0.0
    %450 = vmatpush1.xpose.msra.mxu0 %v274
    %451 = vmatprep.subr.mxu0 0.0
    %452 = vmatpush1.xpose.msra.mxu0 %v277
    %453 = vmatprep.subr.mxu0 0.0
    %454 = vmatpush1.xpose.msra.mxu0 %v280
    %455 = vmatprep.subr.mxu0 0.0
    %456 = vmatpush1.xpose.msra.mxu0 %v283
    %457 = vmatprep.subr.mxu0 0.0
    %458 = vmatpush1.xpose.msra.mxu0 %v286
    %459 = vmatprep.subr.mxu0 0.0
    %460 = vmatpush1.xpose.msra.mxu0 %v289
    %461 = vmatprep.subr.mxu0 0.0
    %462 = vmatpush1.xpose.msra.mxu0 %v292
    %463 = vmatprep.subr.mxu0 0.0
    %464 = vmatpush1.xpose.msra.mxu0 %v295
    %465 = vmatprep.subr.mxu0 0.0
    %466 = vmatpush1.xpose.msra.mxu0 %v298
    %467 = vmatprep.subr.mxu0 0.0
    %468 = vmatpush1.xpose.msra.mxu0 %v301
    %469 = vmatprep.subr.mxu0 0.0
    %470 = vmatpush1.xpose.msra.mxu0 %v304
    %471 = vmatprep.subr.mxu0 0.0
    %472 = vmatpush1.xpose.msra.mxu0 %v307
    %473 = vmatprep.subr.mxu0 0.0
    %474 = vmatpush1.xpose.msra.mxu0 %v310
    %475 = vmatprep.subr.mxu0 0.0
    %476 = vmatpush1.xpose.msra.mxu0 %v313
    %477 = vmatprep.subr.mxu0 0.0
    %478 = vmatpush1.xpose.msra.mxu0 %v316
    %479 = vmatprep.subr.mxu0 0.0
    %480 = vmatpush1.xpose.msra.mxu0 %v319
    %481 = vmatprep.subr.mxu0 0.0
    %482 = vmatpush1.xpose.msra.mxu0 %v322
    %483 = vmatprep.subr.mxu0 0.0
    %484 = vmatpush1.xpose.msra.mxu0 %v325
    %485 = vmatprep.subr.mxu0 0.0
    %486 = vmatpush1.xpose.msra.mxu0 %v328
    %487 = vmatprep.subr.mxu0 0.0
    %488 = vmatpush1.xpose.msra.mxu0 %v331
    %489 = vmatprep.subr.mxu0 0.0
    %490 = vmatpush1.xpose.msra.mxu0 %v334
    %491 = vmatprep.subr.mxu0 0.0
    %492 = vmatpush1.xpose.msra.mxu0 %v337
    %493 = vmatprep.subr.mxu0 0.0
    %494 = vmatpush1.xpose.msra.mxu0 %v340
    %495 = vmatprep.mubr.f32.mxu0 0.0
    %496 = vmatmul.mubr.f32.gmra.mrb[0].mxu0 %v139
    %v497 = vpop.f32.mrb[0].mxu0
    %v498 = vadd.f32 %v120, %v497
    %v499 = vpop.f32.mrb[0].mxu0
    %v500 = vadd.f32 %v120, %v499
    %501 = vmatprep.mubr.f32.mxu0 0.0
    %502 = vmatmul.mubr.f32.gmra.mrb[0].mxu0 %v142
    %v503 = vpop.f32.mrb[0].mxu0
    %v504 = vadd.f32 %v125, %v503
    %v505 = vpop.f32.mrb[0].mxu0
    %v506 = vadd.f32 %v125, %v505
    %507 = vmatprep.mubr.f32.mxu0 0.0
    %508 = vmatmul.mubr.f32.gmra.mrb[0].mxu0 %v145
    %v509 = vpop.f32.mrb[0].mxu0
    %v510 = vadd.f32 %v130, %v509
    %v511 = vpop.f32.mrb[0].mxu0
    %v512 = vadd.f32 %v130, %v511
    %513 = vmatprep.mubr.f32.mxu0 0.0
    %514 = vmatmul.mubr.f32.gmra.mrb[0].mxu0 %v148
    %v515 = vpop.f32.mrb[0].mxu0
    %v516 = vadd.f32 %v135, %v515
    %v517 = vpop.f32.mrb[0].mxu0
    %v518 = vadd.f32 %v135, %v517
    %519 = vdwg.mxu0
    %v520 = vmax.f32 %v409, 0.0
    %v521 = vmax.f32 %v411, 0.0
    %v522 = vmax.f32 %v498, 0.0
    %v523 = vmax.f32 %v500, 0.0
    %v524 = vmax.f32 %v415, 0.0
    %v525 = vmax.f32 %v417, 0.0
    %v526 = vmax.f32 %v504, 0.0
    %v527 = vmax.f32 %v506, 0.0
    %v528 = vmax.f32 %v421, 0.0
    %v529 = vmax.f32 %v423, 0.0
    %v530 = vmax.f32 %v510, 0.0
    %v531 = vmax.f32 %v512, 0.0
    %v532 = vmax.f32 %v427, 0.0
    %v533 = vmax.f32 %v429, 0.0
    %v534 = vmax.f32 %v516, 0.0
    %v535 = vmax.f32 %v518, 0.0
    %v536 = vld [vmem:[%s3] sm:$0xff]
    %v537 = vld [vmem:[%s3 + $0x8] sm:$0xff]
    %v538 = vld [vmem:[%s3 + $0x10] sm:$0xff]
    %v539 = vld [vmem:[%s3 + $0x18] sm:$0xff]
    %v540 = vld [vmem:[%s4] sm:$0xff]
    %v541 = vld [vmem:[%s4 + $0x8] sm:$0xff]
    %v542 = vld [vmem:[%s4 + $0x10] sm:$0xff]
    %v543 = vld [vmem:[%s4 + $0x18] sm:$0xff]
    %545 = vset.pattern.permute.xlu0 0
    %546 = vperm.xlu0 %545, %v540
    %v547 = vpop.permute.xlu0 %546
    %550 = vset.pattern.permute.xlu0 0
    %551 = vperm.xlu0 %550, %v541
    %v552 = vpop.permute.xlu0 %551
    %555 = vset.pattern.permute.xlu0 0
    %556 = vperm.xlu0 %555, %v542
    %v557 = vpop.permute.xlu0 %556
    %560 = vset.pattern.permute.xlu0 0
    %561 = vperm.xlu0 %560, %v543
    %v562 = vpop.permute.xlu0 %561
    %vm564 = vcmask 261120
    %v566 = vsel %vm564, %v536, 0
    %v569 = vsel %vm564, %v537, 0
    %v572 = vsel %vm564, %v538, 0
    %v575 = vsel %vm564, %v539, 0
    %577 = vmatprep.subr.mxu0 %v521
    %578 = vmatpush1.msra.mxu0 %v520
    %579 = vmatprep.subr.mxu0 %v525
    %580 = vmatpush1.msra.mxu0 %v524
    %581 = vmatprep.subr.mxu0 %v529
    %582 = vmatpush1.msra.mxu0 %v528
    %583 = vmatprep.subr.mxu0 %v533
    %584 = vmatpush1.msra.mxu0 %v532
    %585 = vmatprep.subr.mxu0 0.0
    %586 = vmatpush1.msra.mxu0 0.0
    %587 = vmatprep.subr.mxu0 0.0
    %588 = vmatpush1.msra.mxu0 0.0
    %589 = vmatprep.subr.mxu0 0.0
    %590 = vmatpush1.msra.mxu0 0.0
    %591 = vmatprep.subr.mxu0 0.0
    %592 = vmatpush1.msra.mxu0 0.0
    %593 = vmatprep.subr.mxu0 0.0
    %594 = vmatpush1.msra.mxu0 0.0
    %595 = vmatprep.subr.mxu0 0.0
    %596 = vmatpush1.msra.mxu0 0.0
    %597 = vmatprep.subr.mxu0 0.0
    %598 = vmatpush1.msra.mxu0 0.0
    %599 = vmatprep.subr.mxu0 0.0
    %600 = vmatpush1.msra.mxu0 0.0
    %601 = vmatprep.subr.mxu0 0.0
    %602 = vmatpush1.msra.mxu0 0.0
    %603 = vmatprep.subr.mxu0 0.0
    %604 = vmatpush1.msra.mxu0 0.0
    %605 = vmatprep.subr.mxu0 0.0
    %606 = vmatpush1.msra.mxu0 0.0
    %607 = vmatprep.subr.mxu0 0.0
    %608 = vmatpush1.msra.mxu0 0.0
    %609 = vmatprep.subr.mxu0 0.0
    %610 = vmatpush1.msra.mxu0 0.0
    %611 = vmatprep.subr.mxu0 0.0
    %612 = vmatpush1.msra.mxu0 0.0
    %613 = vmatprep.subr.mxu0 0.0
    %614 = vmatpush1.msra.mxu0 0.0
    %615 = vmatprep.subr.mxu0 0.0
    %616 = vmatpush1.msra.mxu0 0.0
    %617 = vmatprep.subr.mxu0 0.0
    %618 = vmatpush1.msra.mxu0 0.0
    %619 = vmatprep.subr.mxu0 0.0
    %620 = vmatpush1.msra.mxu0 0.0
    %621 = vmatprep.subr.mxu0 0.0
    %622 = vmatpush1.msra.mxu0 0.0
    %623 = vmatprep.subr.mxu0 0.0
    %624 = vmatpush1.msra.mxu0 0.0
    %625 = vmatprep.subr.mxu0 0.0
    %626 = vmatpush1.msra.mxu0 0.0
    %627 = vmatprep.subr.mxu0 0.0
    %628 = vmatpush1.msra.mxu0 0.0
    %629 = vmatprep.subr.mxu0 0.0
    %630 = vmatpush1.msra.mxu0 0.0
    %631 = vmatprep.subr.mxu0 0.0
    %632 = vmatpush1.msra.mxu0 0.0
    %633 = vmatprep.subr.mxu0 0.0
    %634 = vmatpush1.msra.mxu0 0.0
    %635 = vmatprep.subr.mxu0 0.0
    %636 = vmatpush1.msra.mxu0 0.0
    %637 = vmatprep.subr.mxu0 0.0
    %638 = vmatpush1.msra.mxu0 0.0
    %639 = vmatprep.subr.mxu0 0.0
    %640 = vmatpush1.msra.mxu0 0.0
    %641 = vmatprep.mubr.f32.mxu0 0.0
    %642 = vmatmul.mubr.f32.gmra.mrb[0].mxu0 %v566
    %v643 = vpop.f32.mrb[0].mxu0
    %v644 = vadd.f32 %v547, %v643
    %v645 = vpop.f32.mrb[0].mxu0
    %v646 = vadd.f32 %v547, %v645
    %647 = vmatprep.mubr.f32.mxu0 0.0
    %648 = vmatmul.mubr.f32.gmra.mrb[0].mxu0 %v569
    %v649 = vpop.f32.mrb[0].mxu0
    %v650 = vadd.f32 %v552, %v649
    %v651 = vpop.f32.mrb[0].mxu0
    %v652 = vadd.f32 %v552, %v651
    %653 = vmatprep.mubr.f32.mxu0 0.0
    %654 = vmatmul.mubr.f32.gmra.mrb[0].mxu0 %v572
    %v655 = vpop.f32.mrb[0].mxu0
    %v656 = vadd.f32 %v557, %v655
    %v657 = vpop.f32.mrb[0].mxu0
    %v658 = vadd.f32 %v557, %v657
    %659 = vmatprep.mubr.f32.mxu0 0.0
    %660 = vmatmul.mubr.f32.gmra.mrb[0].mxu0 %v575
    %v661 = vpop.f32.mrb[0].mxu0
    %v662 = vadd.f32 %v562, %v661
    %v663 = vpop.f32.mrb[0].mxu0
    %v664 = vadd.f32 %v562, %v663
    %665 = vdwg.mxu0
    %666 = vmatprep.subr.mxu0 %v523
    %667 = vmatpush1.msra.mxu0 %v522
    %668 = vmatprep.subr.mxu0 %v527
    %669 = vmatpush1.msra.mxu0 %v526
    %670 = vmatprep.subr.mxu0 %v531
    %671 = vmatpush1.msra.mxu0 %v530
    %672 = vmatprep.subr.mxu0 %v535
    %673 = vmatpush1.msra.mxu0 %v534
    %674 = vmatprep.subr.mxu0 0.0
    %675 = vmatpush1.msra.mxu0 0.0
    %676 = vmatprep.subr.mxu0 0.0
    %677 = vmatpush1.msra.mxu0 0.0
    %678 = vmatprep.subr.mxu0 0.0
    %679 = vmatpush1.msra.mxu0 0.0
    %680 = vmatprep.subr.mxu0 0.0
    %681 = vmatpush1.msra.mxu0 0.0
    %682 = vmatprep.subr.mxu0 0.0
    %683 = vmatpush1.msra.mxu0 0.0
    %684 = vmatprep.subr.mxu0 0.0
    %685 = vmatpush1.msra.mxu0 0.0
    %686 = vmatprep.subr.mxu0 0.0
    %687 = vmatpush1.msra.mxu0 0.0
    %688 = vmatprep.subr.mxu0 0.0
    %689 = vmatpush1.msra.mxu0 0.0
    %690 = vmatprep.subr.mxu0 0.0
    %691 = vmatpush1.msra.mxu0 0.0
    %692 = vmatprep.subr.mxu0 0.0
    %693 = vmatpush1.msra.mxu0 0.0
    %694 = vmatprep.subr.mxu0 0.0
    %695 = vmatpush1.msra.mxu0 0.0
    %696 = vmatprep.subr.mxu0 0.0
    %697 = vmatpush1.msra.mxu0 0.0
    %698 = vmatprep.subr.mxu0 0.0
    %699 = vmatpush1.msra.mxu0 0.0
    %700 = vmatprep.subr.mxu0 0.0
    %701 = vmatpush1.msra.mxu0 0.0
    %702 = vmatprep.subr.mxu0 0.0
    %703 = vmatpush1.msra.mxu0 0.0
    %704 = vmatprep.subr.mxu0 0.0
    %705 = vmatpush1.msra.mxu0 0.0
    %706 = vmatprep.subr.mxu0 0.0
    %707 = vmatpush1.msra.mxu0 0.0
    %708 = vmatprep.subr.mxu0 0.0
    %709 = vmatpush1.msra.mxu0 0.0
    %710 = vmatprep.subr.mxu0 0.0
    %711 = vmatpush1.msra.mxu0 0.0
    %712 = vmatprep.subr.mxu0 0.0
    %713 = vmatpush1.msra.mxu0 0.0
    %714 = vmatprep.subr.mxu0 0.0
    %715 = vmatpush1.msra.mxu0 0.0
    %716 = vmatprep.subr.mxu0 0.0
    %717 = vmatpush1.msra.mxu0 0.0
    %718 = vmatprep.subr.mxu0 0.0
    %719 = vmatpush1.msra.mxu0 0.0
    %720 = vmatprep.subr.mxu0 0.0
    %721 = vmatpush1.msra.mxu0 0.0
    %722 = vmatprep.subr.mxu0 0.0
    %723 = vmatpush1.msra.mxu0 0.0
    %724 = vmatprep.subr.mxu0 0.0
    %725 = vmatpush1.msra.mxu0 0.0
    %726 = vmatprep.subr.mxu0 0.0
    %727 = vmatpush1.msra.mxu0 0.0
    %728 = vmatprep.subr.mxu0 0.0
    %729 = vmatpush1.msra.mxu0 0.0
    %730 = vmatprep.mubr.f32.mxu0 0.0
    %731 = vmatmul.mubr.f32.gmra.mrb[0].mxu0 %v566
    %v732 = vpop.f32.mrb[0].mxu0
    %v733 = vadd.f32 %v547, %v732
    %v734 = vpop.f32.mrb[0].mxu0
    %v735 = vadd.f32 %v547, %v734
    %736 = vmatprep.mubr.f32.mxu0 0.0
    %737 = vmatmul.mubr.f32.gmra.mrb[0].mxu0 %v569
    %v738 = vpop.f32.mrb[0].mxu0
    %v739 = vadd.f32 %v552, %v738
    %v740 = vpop.f32.mrb[0].mxu0
    %v741 = vadd.f32 %v552, %v740
    %742 = vmatprep.mubr.f32.mxu0 0.0
    %743 = vmatmul.mubr.f32.gmra.mrb[0].mxu0 %v572
    %v744 = vpop.f32.mrb[0].mxu0
    %v745 = vadd.f32 %v557, %v744
    %v746 = vpop.f32.mrb[0].mxu0
    %v747 = vadd.f32 %v557, %v746
    %748 = vmatprep.mubr.f32.mxu0 0.0
    %749 = vmatmul.mubr.f32.gmra.mrb[0].mxu0 %v575
    %v750 = vpop.f32.mrb[0].mxu0
    %v751 = vadd.f32 %v562, %v750
    %v752 = vpop.f32.mrb[0].mxu0
    %v753 = vadd.f32 %v562, %v752
    %754 = vdwg.mxu0
    %v755 = vmax.f32 %v644, 0.0
    %v756 = vmax.f32 %v646, 0.0
    %v757 = vmax.f32 %v733, 0.0
    %v758 = vmax.f32 %v735, 0.0
    %v759 = vmax.f32 %v650, 0.0
    %v760 = vmax.f32 %v652, 0.0
    %v761 = vmax.f32 %v739, 0.0
    %v762 = vmax.f32 %v741, 0.0
    %v763 = vmax.f32 %v656, 0.0
    %v764 = vmax.f32 %v658, 0.0
    %v765 = vmax.f32 %v745, 0.0
    %v766 = vmax.f32 %v747, 0.0
    %v767 = vmax.f32 %v662, 0.0
    %v768 = vmax.f32 %v664, 0.0
    %v769 = vmax.f32 %v751, 0.0
    %v770 = vmax.f32 %v753, 0.0
    %v771 = vld [vmem:[%s9] sm:$0x3]
    %v772 = vld [vmem:[%s10] sm:$0x3]
    %774 = vset.pattern.permute.xlu0 0
    %775 = vperm.xlu0 %774, %v772
    %v776 = vpop.permute.xlu0 %775
    %v779 = vsel %vm564, %v771, 0
    %781 = vmatprep.subr.mxu0 %v756
    %782 = vmatpush1.msra.mxu0 %v755
    %783 = vmatprep.subr.mxu0 %v760
    %784 = vmatpush1.msra.mxu0 %v759
    %785 = vmatprep.subr.mxu0 %v764
    %786 = vmatpush1.msra.mxu0 %v763
    %787 = vmatprep.subr.mxu0 %v768
    %788 = vmatpush1.msra.mxu0 %v767
    %789 = vmatprep.subr.mxu0 0.0
    %790 = vmatpush1.msra.mxu0 0.0
    %791 = vmatprep.subr.mxu0 0.0
    %792 = vmatpush1.msra.mxu0 0.0
    %793 = vmatprep.subr.mxu0 0.0
    %794 = vmatpush1.msra.mxu0 0.0
    %795 = vmatprep.subr.mxu0 0.0
    %796 = vmatpush1.msra.mxu0 0.0
    %797 = vmatprep.subr.mxu0 0.0
    %798 = vmatpush1.msra.mxu0 0.0
    %799 = vmatprep.subr.mxu0 0.0
    %800 = vmatpush1.msra.mxu0 0.0
    %801 = vmatprep.subr.mxu0 0.0
    %802 = vmatpush1.msra.mxu0 0.0
    %803 = vmatprep.subr.mxu0 0.0
    %804 = vmatpush1.msra.mxu0 0.0
    %805 = vmatprep.subr.mxu0 0.0
    %806 = vmatpush1.msra.mxu0 0.0
    %807 = vmatprep.subr.mxu0 0.0
    %808 = vmatpush1.msra.mxu0 0.0
    %809 = vmatprep.subr.mxu0 0.0
    %810 = vmatpush1.msra.mxu0 0.0
    %811 = vmatprep.subr.mxu0 0.0
    %812 = vmatpush1.msra.mxu0 0.0
    %813 = vmatprep.subr.mxu0 0.0
    %814 = vmatpush1.msra.mxu0 0.0
    %815 = vmatprep.subr.mxu0 0.0
    %816 = vmatpush1.msra.mxu0 0.0
    %817 = vmatprep.subr.mxu0 0.0
    %818 = vmatpush1.msra.mxu0 0.0
    %819 = vmatprep.subr.mxu0 0.0
    %820 = vmatpush1.msra.mxu0 0.0
    %821 = vmatprep.subr.mxu0 0.0
    %822 = vmatpush1.msra.mxu0 0.0
    %823 = vmatprep.subr.mxu0 0.0
    %824 = vmatpush1.msra.mxu0 0.0
    %825 = vmatprep.subr.mxu0 0.0
    %826 = vmatpush1.msra.mxu0 0.0
    %827 = vmatprep.subr.mxu0 0.0
    %828 = vmatpush1.msra.mxu0 0.0
    %829 = vmatprep.subr.mxu0 0.0
    %830 = vmatpush1.msra.mxu0 0.0
    %831 = vmatprep.subr.mxu0 0.0
    %832 = vmatpush1.msra.mxu0 0.0
    %833 = vmatprep.subr.mxu0 0.0
    %834 = vmatpush1.msra.mxu0 0.0
    %835 = vmatprep.subr.mxu0 0.0
    %836 = vmatpush1.msra.mxu0 0.0
    %837 = vmatprep.subr.mxu0 0.0
    %838 = vmatpush1.msra.mxu0 0.0
    %839 = vmatprep.subr.mxu0 0.0
    %840 = vmatpush1.msra.mxu0 0.0
    %841 = vmatprep.subr.mxu0 0.0
    %842 = vmatpush1.msra.mxu0 0.0
    %843 = vmatprep.subr.mxu0 0.0
    %844 = vmatpush1.msra.mxu0 0.0
    %845 = vmatprep.mubr.f32.mxu0 0.0
    %846 = vmatmul.mubr.f32.gmra.mrb[0].mxu0 %v779
    %v847 = vpop.f32.mrb[0].mxu0
    %v848 = vadd.f32 %v776, %v847
    %v849 = vpop.f32.mrb[0].mxu0
    %v850 = vadd.f32 %v776, %v849
    %851 = vdwg.mxu0
    %852 = vmatprep.subr.mxu0 %v758
    %853 = vmatpush1.msra.mxu0 %v757
    %854 = vmatprep.subr.mxu0 %v762
    %855 = vmatpush1.msra.mxu0 %v761
    %856 = vmatprep.subr.mxu0 %v766
    %857 = vmatpush1.msra.mxu0 %v765
    %858 = vmatprep.subr.mxu0 %v770
    %859 = vmatpush1.msra.mxu0 %v769
    %860 = vmatprep.subr.mxu0 0.0
    %861 = vmatpush1.msra.mxu0 0.0
    %862 = vmatprep.subr.mxu0 0.0
    %863 = vmatpush1.msra.mxu0 0.0
    %864 = vmatprep.subr.mxu0 0.0
    %865 = vmatpush1.msra.mxu0 0.0
    %866 = vmatprep.subr.mxu0 0.0
    %867 = vmatpush1.msra.mxu0 0.0
    %868 = vmatprep.subr.mxu0 0.0
    %869 = vmatpush1.msra.mxu0 0.0
    %870 = vmatprep.subr.mxu0 0.0
    %871 = vmatpush1.msra.mxu0 0.0
    %872 = vmatprep.subr.mxu0 0.0
    %873 = vmatpush1.msra.mxu0 0.0
    %874 = vmatprep.subr.mxu0 0.0
    %875 = vmatpush1.msra.mxu0 0.0
    %876 = vmatprep.subr.mxu0 0.0
    %877 = vmatpush1.msra.mxu0 0.0
    %878 = vmatprep.subr.mxu0 0.0
    %879 = vmatpush1.msra.mxu0 0.0
    %880 = vmatprep.subr.mxu0 0.0
    %881 = vmatpush1.msra.mxu0 0.0
    %882 = vmatprep.subr.mxu0 0.0
    %883 = vmatpush1.msra.mxu0 0.0
    %884 = vmatprep.subr.mxu0 0.0
    %885 = vmatpush1.msra.mxu0 0.0
    %886 = vmatprep.subr.mxu0 0.0
    %887 = vmatpush1.msra.mxu0 0.0
    %888 = vmatprep.subr.mxu0 0.0
    %889 = vmatpush1.msra.mxu0 0.0
    %890 = vmatprep.subr.mxu0 0.0
    %891 = vmatpush1.msra.mxu0 0.0
    %892 = vmatprep.subr.mxu0 0.0
    %893 = vmatpush1.msra.mxu0 0.0
    %894 = vmatprep.subr.mxu0 0.0
    %895 = vmatpush1.msra.mxu0 0.0
    %896 = vmatprep.subr.mxu0 0.0
    %897 = vmatpush1.msra.mxu0 0.0
    %898 = vmatprep.subr.mxu0 0.0
    %899 = vmatpush1.msra.mxu0 0.0
    %900 = vmatprep.subr.mxu0 0.0
    %901 = vmatpush1.msra.mxu0 0.0
    %902 = vmatprep.subr.mxu0 0.0
    %903 = vmatpush1.msra.mxu0 0.0
    %904 = vmatprep.subr.mxu0 0.0
    %905 = vmatpush1.msra.mxu0 0.0
    %906 = vmatprep.subr.mxu0 0.0
    %907 = vmatpush1.msra.mxu0 0.0
    %908 = vmatprep.subr.mxu0 0.0
    %909 = vmatpush1.msra.mxu0 0.0
    %910 = vmatprep.subr.mxu0 0.0
    %911 = vmatpush1.msra.mxu0 0.0
    %912 = vmatprep.subr.mxu0 0.0
    %913 = vmatpush1.msra.mxu0 0.0
    %914 = vmatprep.subr.mxu0 0.0
    %915 = vmatpush1.msra.mxu0 0.0
    %916 = vmatprep.mubr.f32.mxu0 0.0
    %917 = vmatmul.mubr.f32.gmra.mrb[0].mxu0 %v779
    %v918 = vpop.f32.mrb[0].mxu0
    %v919 = vadd.f32 %v776, %v918
    %v920 = vpop.f32.mrb[0].mxu0
    %v921 = vadd.f32 %v776, %v920
    %922 = vdwg.mxu0
    %v923 = vld [vmem:[%s5] sm:$0xff]
    %v924 = vld [vmem:[%s5 + $0x8] sm:$0xff]
    %v925 = vld [vmem:[%s6] sm:$0xff]
    %v926 = vld [vmem:[%s6 + $0x8] sm:$0xff]
    %928 = vset.pattern.permute.xlu0 0
    %929 = vperm.xlu0 %928, %v925
    %v930 = vpop.permute.xlu0 %929
    %933 = vset.pattern.permute.xlu0 0
    %934 = vperm.xlu0 %933, %v926
    %v935 = vpop.permute.xlu0 %934
    %v938 = vsel %vm564, %v923, 0
    %v941 = vsel %vm564, %v924, 0
    %943 = vmatprep.subr.mxu0 %v756
    %944 = vmatpush1.msra.mxu0 %v755
    %945 = vmatprep.subr.mxu0 %v760
    %946 = vmatpush1.msra.mxu0 %v759
    %947 = vmatprep.subr.mxu0 %v764
    %948 = vmatpush1.msra.mxu0 %v763
    %949 = vmatprep.subr.mxu0 %v768
    %950 = vmatpush1.msra.mxu0 %v767
    %951 = vmatprep.subr.mxu0 0.0
    %952 = vmatpush1.msra.mxu0 0.0
    %953 = vmatprep.subr.mxu0 0.0
    %954 = vmatpush1.msra.mxu0 0.0
    %955 = vmatprep.subr.mxu0 0.0
    %956 = vmatpush1.msra.mxu0 0.0
    %957 = vmatprep.subr.mxu0 0.0
    %958 = vmatpush1.msra.mxu0 0.0
    %959 = vmatprep.subr.mxu0 0.0
    %960 = vmatpush1.msra.mxu0 0.0
    %961 = vmatprep.subr.mxu0 0.0
    %962 = vmatpush1.msra.mxu0 0.0
    %963 = vmatprep.subr.mxu0 0.0
    %964 = vmatpush1.msra.mxu0 0.0
    %965 = vmatprep.subr.mxu0 0.0
    %966 = vmatpush1.msra.mxu0 0.0
    %967 = vmatprep.subr.mxu0 0.0
    %968 = vmatpush1.msra.mxu0 0.0
    %969 = vmatprep.subr.mxu0 0.0
    %970 = vmatpush1.msra.mxu0 0.0
    %971 = vmatprep.subr.mxu0 0.0
    %972 = vmatpush1.msra.mxu0 0.0
    %973 = vmatprep.subr.mxu0 0.0
    %974 = vmatpush1.msra.mxu0 0.0
    %975 = vmatprep.subr.mxu0 0.0
    %976 = vmatpush1.msra.mxu0 0.0
    %977 = vmatprep.subr.mxu0 0.0
    %978 = vmatpush1.msra.mxu0 0.0
    %979 = vmatprep.subr.mxu0 0.0
    %980 = vmatpush1.msra.mxu0 0.0
    %981 = vmatprep.subr.mxu0 0.0
    %982 = vmatpush1.msra.mxu0 0.0
    %983 = vmatprep.subr.mxu0 0.0
    %984 = vmatpush1.msra.mxu0 0.0
    %985 = vmatprep.subr.mxu0 0.0
    %986 = vmatpush1.msra.mxu0 0.0
    %987 = vmatprep.subr.mxu0 0.0
    %988 = vmatpush1.msra.mxu0 0.0
    %989 = vmatprep.subr.mxu0 0.0
    %990 = vmatpush1.msra.mxu0 0.0
    %991 = vmatprep.subr.mxu0 0.0
    %992 = vmatpush1.msra.mxu0 0.0
    %993 = vmatprep.subr.mxu0 0.0
    %994 = vmatpush1.msra.mxu0 0.0
    %995 = vmatprep.subr.mxu0 0.0
    %996 = vmatpush1.msra.mxu0 0.0
    %997 = vmatprep.subr.mxu0 0.0
    %998 = vmatpush1.msra.mxu0 0.0
    %999 = vmatprep.subr.mxu0 0.0
    %1000 = vmatpush1.msra.mxu0 0.0
    %1001 = vmatprep.subr.mxu0 0.0
    %1002 = vmatpush1.msra.mxu0 0.0
    %1003 = vmatprep.subr.mxu0 0.0
    %1004 = vmatpush1.msra.mxu0 0.0
    %1005 = vmatprep.subr.mxu0 0.0
    %1006 = vmatpush1.msra.mxu0 0.0
    %1007 = vmatprep.mubr.f32.mxu0 0.0
    %1008 = vmatmul.mubr.f32.gmra.mrb[0].mxu0 %v938
    %v1009 = vpop.f32.mrb[0].mxu0
    %v1010 = vadd.f32 %v930, %v1009
    %v1011 = vpop.f32.mrb[0].mxu0
    %v1012 = vadd.f32 %v930, %v1011
    %1013 = vmatprep.mubr.f32.mxu0 0.0
    %1014 = vmatmul.mubr.f32.gmra.mrb[0].mxu0 %v941
    %v1015 = vpop.f32.mrb[0].mxu0
    %v1016 = vadd.f32 %v935, %v1015
    %v1017 = vpop.f32.mrb[0].mxu0
    %v1018 = vadd.f32 %v935, %v1017
    %1019 = vdwg.mxu0
    %1020 = vmatprep.subr.mxu0 %v758
    %1021 = vmatpush1.msra.mxu0 %v757
    %1022 = vmatprep.subr.mxu0 %v762
    %1023 = vmatpush1.msra.mxu0 %v761
    %1024 = vmatprep.subr.mxu0 %v766
    %1025 = vmatpush1.msra.mxu0 %v765
    %1026 = vmatprep.subr.mxu0 %v770
    %1027 = vmatpush1.msra.mxu0 %v769
    %1028 = vmatprep.subr.mxu0 0.0
    %1029 = vmatpush1.msra.mxu0 0.0
    %1030 = vmatprep.subr.mxu0 0.0
    %1031 = vmatpush1.msra.mxu0 0.0
    %1032 = vmatprep.subr.mxu0 0.0
    %1033 = vmatpush1.msra.mxu0 0.0
    %1034 = vmatprep.subr.mxu0 0.0
    %1035 = vmatpush1.msra.mxu0 0.0
    %1036 = vmatprep.subr.mxu0 0.0
    %1037 = vmatpush1.msra.mxu0 0.0
    %1038 = vmatprep.subr.mxu0 0.0
    %1039 = vmatpush1.msra.mxu0 0.0
    %1040 = vmatprep.subr.mxu0 0.0
    %1041 = vmatpush1.msra.mxu0 0.0
    %1042 = vmatprep.subr.mxu0 0.0
    %1043 = vmatpush1.msra.mxu0 0.0
    %1044 = vmatprep.subr.mxu0 0.0
    %1045 = vmatpush1.msra.mxu0 0.0
    %1046 = vmatprep.subr.mxu0 0.0
    %1047 = vmatpush1.msra.mxu0 0.0
    %1048 = vmatprep.subr.mxu0 0.0
    %1049 = vmatpush1.msra.mxu0 0.0
    %1050 = vmatprep.subr.mxu0 0.0
    %1051 = vmatpush1.msra.mxu0 0.0
    %1052 = vmatprep.subr.mxu0 0.0
    %1053 = vmatpush1.msra.mxu0 0.0
    %1054 = vmatprep.subr.mxu0 0.0
    %1055 = vmatpush1.msra.mxu0 0.0
    %1056 = vmatprep.subr.mxu0 0.0
    %1057 = vmatpush1.msra.mxu0 0.0
    %1058 = vmatprep.subr.mxu0 0.0
    %1059 = vmatpush1.msra.mxu0 0.0
    %1060 = vmatprep.subr.mxu0 0.0
    %1061 = vmatpush1.msra.mxu0 0.0
    %1062 = vmatprep.subr.mxu0 0.0
    %1063 = vmatpush1.msra.mxu0 0.0
    %1064 = vmatprep.subr.mxu0 0.0
    %1065 = vmatpush1.msra.mxu0 0.0
    %1066 = vmatprep.subr.mxu0 0.0
    %1067 = vmatpush1.msra.mxu0 0.0
    %1068 = vmatprep.subr.mxu0 0.0
    %1069 = vmatpush1.msra.mxu0 0.0
    %1070 = vmatprep.subr.mxu0 0.0
    %1071 = vmatpush1.msra.mxu0 0.0
    %1072 = vmatprep.subr.mxu0 0.0
    %1073 = vmatpush1.msra.mxu0 0.0
    %1074 = vmatprep.subr.mxu0 0.0
    %1075 = vmatpush1.msra.mxu0 0.0
    %1076 = vmatprep.subr.mxu0 0.0
    %1077 = vmatpush1.msra.mxu0 0.0
    %1078 = vmatprep.subr.mxu0 0.0
    %1079 = vmatpush1.msra.mxu0 0.0
    %1080 = vmatprep.subr.mxu0 0.0
    %1081 = vmatpush1.msra.mxu0 0.0
    %1082 = vmatprep.subr.mxu0 0.0
    %1083 = vmatpush1.msra.mxu0 0.0
    %1084 = vmatprep.mubr.f32.mxu0 0.0
    %1085 = vmatmul.mubr.f32.gmra.mrb[0].mxu0 %v938
    %v1086 = vpop.f32.mrb[0].mxu0
    %v1087 = vadd.f32 %v930, %v1086
    %v1088 = vpop.f32.mrb[0].mxu0
    %v1089 = vadd.f32 %v930, %v1088
    %1090 = vmatprep.mubr.f32.mxu0 0.0
    %1091 = vmatmul.mubr.f32.gmra.mrb[0].mxu0 %v941
    %v1092 = vpop.f32.mrb[0].mxu0
    %v1093 = vadd.f32 %v935, %v1092
    %v1094 = vpop.f32.mrb[0].mxu0
    %v1095 = vadd.f32 %v935, %v1094
    %1096 = vdwg.mxu0
    %v1097 = vmax.f32 %v1010, 0.0
    %v1098 = vmax.f32 %v1012, 0.0
    %v1099 = vmax.f32 %v1087, 0.0
    %v1100 = vmax.f32 %v1089, 0.0
    %v1101 = vmax.f32 %v1016, 0.0
    %v1102 = vmax.f32 %v1018, 0.0
    %v1103 = vmax.f32 %v1093, 0.0
    %v1104 = vmax.f32 %v1095, 0.0
    %v1105 = vld [vmem:[%s7] sm:$0xf]
    %v1106 = vld [vmem:[%s8] sm:$0xf]
    %1108 = vset.pattern.permute.xlu0 0
    %1109 = vperm.xlu0 %1108, %v1106
    %v1110 = vpop.permute.xlu0 %1109
    %vm1112 = vcmask 130048
    %v1114 = vsel %vm1112, %v1105, 0
    %1116 = vmatprep.subr.mxu0 %v1098
    %1117 = vmatpush1.msra.mxu0 %v1097
    %1118 = vmatprep.subr.mxu0 %v1102
    %1119 = vmatpush1.msra.mxu0 %v1101
    %1120 = vmatprep.subr.mxu0 0.0
    %1121 = vmatpush1.msra.mxu0 0.0
    %1122 = vmatprep.subr.mxu0 0.0
    %1123 = vmatpush1.msra.mxu0 0.0
    %1124 = vmatprep.subr.mxu0 0.0
    %1125 = vmatpush1.msra.mxu0 0.0
    %1126 = vmatprep.subr.mxu0 0.0
    %1127 = vmatpush1.msra.mxu0 0.0
    %1128 = vmatprep.subr.mxu0 0.0
    %1129 = vmatpush1.msra.mxu0 0.0
    %1130 = vmatprep.subr.mxu0 0.0
    %1131 = vmatpush1.msra.mxu0 0.0
    %1132 = vmatprep.subr.mxu0 0.0
    %1133 = vmatpush1.msra.mxu0 0.0
    %1134 = vmatprep.subr.mxu0 0.0
    %1135 = vmatpush1.msra.mxu0 0.0
    %1136 = vmatprep.subr.mxu0 0.0
    %1137 = vmatpush1.msra.mxu0 0.0
    %1138 = vmatprep.subr.mxu0 0.0
    %1139 = vmatpush1.msra.mxu0 0.0
    %1140 = vmatprep.subr.mxu0 0.0
    %1141 = vmatpush1.msra.mxu0 0.0
    %1142 = vmatprep.subr.mxu0 0.0
    %1143 = vmatpush1.msra.mxu0 0.0
    %1144 = vmatprep.subr.mxu0 0.0
    %1145 = vmatpush1.msra.mxu0 0.0
    %1146 = vmatprep.subr.mxu0 0.0
    %1147 = vmatpush1.msra.mxu0 0.0
    %1148 = vmatprep.subr.mxu0 0.0
    %1149 = vmatpush1.msra.mxu0 0.0
    %1150 = vmatprep.subr.mxu0 0.0
    %1151 = vmatpush1.msra.mxu0 0.0
    %1152 = vmatprep.subr.mxu0 0.0
    %1153 = vmatpush1.msra.mxu0 0.0
    %1154 = vmatprep.subr.mxu0 0.0
    %1155 = vmatpush1.msra.mxu0 0.0
    %1156 = vmatprep.subr.mxu0 0.0
    %1157 = vmatpush1.msra.mxu0 0.0
    %1158 = vmatprep.subr.mxu0 0.0
    %1159 = vmatpush1.msra.mxu0 0.0
    %1160 = vmatprep.subr.mxu0 0.0
    %1161 = vmatpush1.msra.mxu0 0.0
    %1162 = vmatprep.subr.mxu0 0.0
    %1163 = vmatpush1.msra.mxu0 0.0
    %1164 = vmatprep.subr.mxu0 0.0
    %1165 = vmatpush1.msra.mxu0 0.0
    %1166 = vmatprep.subr.mxu0 0.0
    %1167 = vmatpush1.msra.mxu0 0.0
    %1168 = vmatprep.subr.mxu0 0.0
    %1169 = vmatpush1.msra.mxu0 0.0
    %1170 = vmatprep.subr.mxu0 0.0
    %1171 = vmatpush1.msra.mxu0 0.0
    %1172 = vmatprep.subr.mxu0 0.0
    %1173 = vmatpush1.msra.mxu0 0.0
    %1174 = vmatprep.subr.mxu0 0.0
    %1175 = vmatpush1.msra.mxu0 0.0
    %1176 = vmatprep.subr.mxu0 0.0
    %1177 = vmatpush1.msra.mxu0 0.0
    %1178 = vmatprep.subr.mxu0 0.0
    %1179 = vmatpush1.msra.mxu0 0.0
    %1180 = vmatprep.mubr.f32.mxu0 0.0
    %1181 = vmatmul.mubr.f32.gmra.mrb[0].mxu0 %v1114
    %v1182 = vpop.f32.mrb[0].mxu0
    %v1183 = vadd.f32 %v1110, %v1182
    %v1184 = vpop.f32.mrb[0].mxu0
    %v1185 = vadd.f32 %v1110, %v1184
    %1186 = vdwg.mxu0
    %1187 = vmatprep.subr.mxu0 %v1100
    %1188 = vmatpush1.msra.mxu0 %v1099
    %1189 = vmatprep.subr.mxu0 %v1104
    %1190 = vmatpush1.msra.mxu0 %v1103
    %1191 = vmatprep.subr.mxu0 0.0
    %1192 = vmatpush1.msra.mxu0 0.0
    %1193 = vmatprep.subr.mxu0 0.0
    %1194 = vmatpush1.msra.mxu0 0.0
    %1195 = vmatprep.subr.mxu0 0.0
    %1196 = vmatpush1.msra.mxu0 0.0
    %1197 = vmatprep.subr.mxu0 0.0
    %1198 = vmatpush1.msra.mxu0 0.0
    %1199 = vmatprep.subr.mxu0 0.0
    %1200 = vmatpush1.msra.mxu0 0.0
    %1201 = vmatprep.subr.mxu0 0.0
    %1202 = vmatpush1.msra.mxu0 0.0
    %1203 = vmatprep.subr.mxu0 0.0
    %1204 = vmatpush1.msra.mxu0 0.0
    %1205 = vmatprep.subr.mxu0 0.0
    %1206 = vmatpush1.msra.mxu0 0.0
    %1207 = vmatprep.subr.mxu0 0.0
    %1208 = vmatpush1.msra.mxu0 0.0
    %1209 = vmatprep.subr.mxu0 0.0
    %1210 = vmatpush1.msra.mxu0 0.0
    %1211 = vmatprep.subr.mxu0 0.0
    %1212 = vmatpush1.msra.mxu0 0.0
    %1213 = vmatprep.subr.mxu0 0.0
    %1214 = vmatpush1.msra.mxu0 0.0
    %1215 = vmatprep.subr.mxu0 0.0
    %1216 = vmatpush1.msra.mxu0 0.0
    %1217 = vmatprep.subr.mxu0 0.0
    %1218 = vmatpush1.msra.mxu0 0.0
    %1219 = vmatprep.subr.mxu0 0.0
    %1220 = vmatpush1.msra.mxu0 0.0
    %1221 = vmatprep.subr.mxu0 0.0
    %1222 = vmatpush1.msra.mxu0 0.0
    %1223 = vmatprep.subr.mxu0 0.0
    %1224 = vmatpush1.msra.mxu0 0.0
    %1225 = vmatprep.subr.mxu0 0.0
    %1226 = vmatpush1.msra.mxu0 0.0
    %1227 = vmatprep.subr.mxu0 0.0
    %1228 = vmatpush1.msra.mxu0 0.0
    %1229 = vmatprep.subr.mxu0 0.0
    %1230 = vmatpush1.msra.mxu0 0.0
    %1231 = vmatprep.subr.mxu0 0.0
    %1232 = vmatpush1.msra.mxu0 0.0
    %1233 = vmatprep.subr.mxu0 0.0
    %1234 = vmatpush1.msra.mxu0 0.0
    %1235 = vmatprep.subr.mxu0 0.0
    %1236 = vmatpush1.msra.mxu0 0.0
    %1237 = vmatprep.subr.mxu0 0.0
    %1238 = vmatpush1.msra.mxu0 0.0
    %1239 = vmatprep.subr.mxu0 0.0
    %1240 = vmatpush1.msra.mxu0 0.0
    %1241 = vmatprep.subr.mxu0 0.0
    %1242 = vmatpush1.msra.mxu0 0.0
    %1243 = vmatprep.subr.mxu0 0.0
    %1244 = vmatpush1.msra.mxu0 0.0
    %1245 = vmatprep.subr.mxu0 0.0
    %1246 = vmatpush1.msra.mxu0 0.0
    %1247 = vmatprep.subr.mxu0 0.0
    %1248 = vmatpush1.msra.mxu0 0.0
    %1249 = vmatprep.subr.mxu0 0.0
    %1250 = vmatpush1.msra.mxu0 0.0
    %1251 = vmatprep.mubr.f32.mxu0 0.0
    %1252 = vmatmul.mubr.f32.gmra.mrb[0].mxu0 %v1114
    %v1253 = vpop.f32.mrb[0].mxu0
    %v1254 = vadd.f32 %v1110, %v1253
    %v1255 = vpop.f32.mrb[0].mxu0
    %v1256 = vadd.f32 %v1110, %v1255
    %1257 = vdwg.mxu0
    %v1258 = vmax.f32 %v1183, 0.0
    %v1259 = vmax.f32 %v1185, 0.0
    %v1260 = vmax.f32 %v1254, 0.0
    %v1261 = vmax.f32 %v1256, 0.0
    %v1262 = vld [vmem:[%s11] sm:$0x3]
    %v1263 = vld [vmem:[%s12] sm:$0x3]
    %1265 = vset.pattern.permute.xlu0 0
    %1266 = vperm.xlu0 %1265, %v1263
    %v1267 = vpop.permute.xlu0 %1266
    %vm1269 = vcmask 31744
    %v1271 = vsel %vm1269, %v1262, 0
    %vm1273 = vcmask 1043456
    %v1275 = vsel %vm1273, %v1258, 0
    %v1278 = vsel %vm1273, %v1259, 0
    %v1281 = vsel %vm1273, %v1260, 0
    %v1284 = vsel %vm1273, %v1261, 0
    %1286 = vmatprep.subr.mxu0 %v1278
    %1287 = vmatpush1.msra.mxu0 %v1275
    %1288 = vmatprep.subr.mxu0 0.0
    %1289 = vmatpush1.msra.mxu0 0.0
    %1290 = vmatprep.subr.mxu0 0.0
    %1291 = vmatpush1.msra.mxu0 0.0
    %1292 = vmatprep.subr.mxu0 0.0
    %1293 = vmatpush1.msra.mxu0 0.0
    %1294 = vmatprep.subr.mxu0 0.0
    %1295 = vmatpush1.msra.mxu0 0.0
    %1296 = vmatprep.subr.mxu0 0.0
    %1297 = vmatpush1.msra.mxu0 0.0
    %1298 = vmatprep.subr.mxu0 0.0
    %1299 = vmatpush1.msra.mxu0 0.0
    %1300 = vmatprep.subr.mxu0 0.0
    %1301 = vmatpush1.msra.mxu0 0.0
    %1302 = vmatprep.subr.mxu0 0.0
    %1303 = vmatpush1.msra.mxu0 0.0
    %1304 = vmatprep.subr.mxu0 0.0
    %1305 = vmatpush1.msra.mxu0 0.0
    %1306 = vmatprep.subr.mxu0 0.0
    %1307 = vmatpush1.msra.mxu0 0.0
    %1308 = vmatprep.subr.mxu0 0.0
    %1309 = vmatpush1.msra.mxu0 0.0
    %1310 = vmatprep.subr.mxu0 0.0
    %1311 = vmatpush1.msra.mxu0 0.0
    %1312 = vmatprep.subr.mxu0 0.0
    %1313 = vmatpush1.msra.mxu0 0.0
    %1314 = vmatprep.subr.mxu0 0.0
    %1315 = vmatpush1.msra.mxu0 0.0
    %1316 = vmatprep.subr.mxu0 0.0
    %1317 = vmatpush1.msra.mxu0 0.0
    %1318 = vmatprep.subr.mxu0 0.0
    %1319 = vmatpush1.msra.mxu0 0.0
    %1320 = vmatprep.subr.mxu0 0.0
    %1321 = vmatpush1.msra.mxu0 0.0
    %1322 = vmatprep.subr.mxu0 0.0
    %1323 = vmatpush1.msra.mxu0 0.0
    %1324 = vmatprep.subr.mxu0 0.0
    %1325 = vmatpush1.msra.mxu0 0.0
    %1326 = vmatprep.subr.mxu0 0.0
    %1327 = vmatpush1.msra.mxu0 0.0
    %1328 = vmatprep.subr.mxu0 0.0
    %1329 = vmatpush1.msra.mxu0 0.0
    %1330 = vmatprep.subr.mxu0 0.0
    %1331 = vmatpush1.msra.mxu0 0.0
    %1332 = vmatprep.subr.mxu0 0.0
    %1333 = vmatpush1.msra.mxu0 0.0
    %1334 = vmatprep.subr.mxu0 0.0
    %1335 = vmatpush1.msra.mxu0 0.0
    %1336 = vmatprep.subr.mxu0 0.0
    %1337 = vmatpush1.msra.mxu0 0.0
    %1338 = vmatprep.subr.mxu0 0.0
    %1339 = vmatpush1.msra.mxu0 0.0
    %1340 = vmatprep.subr.mxu0 0.0
    %1341 = vmatpush1.msra.mxu0 0.0
    %1342 = vmatprep.subr.mxu0 0.0
    %1343 = vmatpush1.msra.mxu0 0.0
    %1344 = vmatprep.subr.mxu0 0.0
    %1345 = vmatpush1.msra.mxu0 0.0
    %1346 = vmatprep.subr.mxu0 0.0
    %1347 = vmatpush1.msra.mxu0 0.0
    %1348 = vmatprep.subr.mxu0 0.0
    %1349 = vmatpush1.msra.mxu0 0.0
    %1350 = vmatprep.mubr.f32.mxu0 0.0
    %1351 = vmatmul.mubr.f32.gmra.mrb[0].mxu0 %v1271
    %v1352 = vpop.f32.mrb[0].mxu0
    %v1353 = vadd.f32 %v1267, %v1352
    %v1354 = vpop.f32.mrb[0].mxu0
    %v1355 = vadd.f32 %v1267, %v1354
    %1356 = vdwg.mxu0
    %1357 = vmatprep.subr.mxu0 %v1284
    %1358 = vmatpush1.msra.mxu0 %v1281
    %1359 = vmatprep.subr.mxu0 0.0
    %1360 = vmatpush1.msra.mxu0 0.0
    %1361 = vmatprep.subr.mxu0 0.0
    %1362 = vmatpush1.msra.mxu0 0.0
    %1363 = vmatprep.subr.mxu0 0.0
    %1364 = vmatpush1.msra.mxu0 0.0
    %1365 = vmatprep.subr.mxu0 0.0
    %1366 = vmatpush1.msra.mxu0 0.0
    %1367 = vmatprep.subr.mxu0 0.0
    %1368 = vmatpush1.msra.mxu0 0.0
    %1369 = vmatprep.subr.mxu0 0.0
    %1370 = vmatpush1.msra.mxu0 0.0
    %1371 = vmatprep.subr.mxu0 0.0
    %1372 = vmatpush1.msra.mxu0 0.0
    %1373 = vmatprep.subr.mxu0 0.0
    %1374 = vmatpush1.msra.mxu0 0.0
    %1375 = vmatprep.subr.mxu0 0.0
    %1376 = vmatpush1.msra.mxu0 0.0
    %1377 = vmatprep.subr.mxu0 0.0
    %1378 = vmatpush1.msra.mxu0 0.0
    %1379 = vmatprep.subr.mxu0 0.0
    %1380 = vmatpush1.msra.mxu0 0.0
    %1381 = vmatprep.subr.mxu0 0.0
    %1382 = vmatpush1.msra.mxu0 0.0
    %1383 = vmatprep.subr.mxu0 0.0
    %1384 = vmatpush1.msra.mxu0 0.0
    %1385 = vmatprep.subr.mxu0 0.0
    %1386 = vmatpush1.msra.mxu0 0.0
    %1387 = vmatprep.subr.mxu0 0.0
    %1388 = vmatpush1.msra.mxu0 0.0
    %1389 = vmatprep.subr.mxu0 0.0
    %1390 = vmatpush1.msra.mxu0 0.0
    %1391 = vmatprep.subr.mxu0 0.0
    %1392 = vmatpush1.msra.mxu0 0.0
    %1393 = vmatprep.subr.mxu0 0.0
    %1394 = vmatpush1.msra.mxu0 0.0
    %1395 = vmatprep.subr.mxu0 0.0
    %1396 = vmatpush1.msra.mxu0 0.0
    %1397 = vmatprep.subr.mxu0 0.0
    %1398 = vmatpush1.msra.mxu0 0.0
    %1399 = vmatprep.subr.mxu0 0.0
    %1400 = vmatpush1.msra.mxu0 0.0
    %1401 = vmatprep.subr.mxu0 0.0
    %1402 = vmatpush1.msra.mxu0 0.0
    %1403 = vmatprep.subr.mxu0 0.0
    %1404 = vmatpush1.msra.mxu0 0.0
    %1405 = vmatprep.subr.mxu0 0.0
    %1406 = vmatpush1.msra.mxu0 0.0
    %1407 = vmatprep.subr.mxu0 0.0
    %1408 = vmatpush1.msra.mxu0 0.0
    %1409 = vmatprep.subr.mxu0 0.0
    %1410 = vmatpush1.msra.mxu0 0.0
    %1411 = vmatprep.subr.mxu0 0.0
    %1412 = vmatpush1.msra.mxu0 0.0
    %1413 = vmatprep.subr.mxu0 0.0
    %1414 = vmatpush1.msra.mxu0 0.0
    %1415 = vmatprep.subr.mxu0 0.0
    %1416 = vmatpush1.msra.mxu0 0.0
    %1417 = vmatprep.subr.mxu0 0.0
    %1418 = vmatpush1.msra.mxu0 0.0
    %1419 = vmatprep.subr.mxu0 0.0
    %1420 = vmatpush1.msra.mxu0 0.0
    %1421 = vmatprep.mubr.f32.mxu0 0.0
    %1422 = vmatmul.mubr.f32.gmra.mrb[0].mxu0 %v1271
    %v1423 = vpop.f32.mrb[0].mxu0
    %v1424 = vadd.f32 %v1267, %v1423
    %v1425 = vpop.f32.mrb[0].mxu0
    %v1426 = vadd.f32 %v1267, %v1425
    %1427 = vdwg.mxu0
    %v1428 = vadd.f32 %v848, %v1353
    %v1429 = vadd.f32 %v850, %v1355
    %v1430 = vadd.f32 %v919, %v1424
    %v1431 = vadd.f32 %v921, %v1426
    %v1436 = vcombine.low %v1428, %v1429
    %v1437 = vcombine.low %v1430, %v1431
    %v1439 = vunpack.c.l.s4 1983009808
    %v1440 = vunpack.c.0.s8 %v1439
    %v1441 = vlaneseq
    %v1442 = vshrl.u32 %v1441, 7
    %v1443 = vsub.s32 %v1440, %v1442
    %v1444 = vrot.slane %v1436, %v1443
    %v1446 = vunpack.c.l.s4 1983009808
    %v1447 = vunpack.c.0.s8 %v1446
    %v1448 = vlaneseq
    %v1449 = vshrl.u32 %v1448, 7
    %v1450 = vsub.s32 %v1447, %v1449
    %v1451 = vrot.slane %v1437, %v1450
    %v1452 = vcombine.low %v1444, %v1451
    %1454 = vst [vmem:[#allocation2] sm:$0xff] %v1452
    // Predicated region
    $region54: #{tpu_custom_call.1} parent=1 // pred_check
      _
    $region55: #{tpu_custom_call.1} parent=1 // pred_check_branch
      %1456 = sbr.rel (0) target = $region57
    $region56: #{tpu_custom_call.1} parent=1 // pred_region
      %s1458 = ssub.s32 128, 128
      %1459 = vsyncadd [#allocation3], %s1458
      %s1461 = sshll.u32 [#allocation2], 4
      %s1462 = int_to_ptr.vmem [resolvable:$true] %s1461
      %1464 = dma.vmem_to_hbm [thread:$0]  %s1462, 128, %s13, [#allocation3]
    $region57: #{tpu_custom_call.1} parent=1 // pred_fallthru
      _
    // Predicated region
    $region58: #{tpu_custom_call.1} parent=1 // pred_check
      _
    $region59: #{tpu_custom_call.1} parent=1 // pred_check_branch
      %1466 = sbr.rel (0) target = $region61
    $region60: #{tpu_custom_call.1} parent=1 // pred_region
      %1467 = dma.done [#allocation3], 128
    $region61: #{tpu_custom_call.1} parent=1 // pred_fallthru
      _
    %1468 = vsyncpa [#allocation3], 1

</llo_original>
